<compile_context>
chip_gen: v5e
topology: v5e:2x2
jax: 0.10.0
libtpu: 0.0.40
codegen_flags: <defaults>
</compile_context>

<pallas_src>
import jax
import jax.numpy as jnp
import numpy as np
from jax.experimental import pallas as pl
from jax.experimental.pallas import tpu as pltpu


def _round_up(x, m):
    return ((x + m - 1) // m) * m


# ----------------------------------------------------------------------------
# fused attention kernel (one batch-block, streaming over sequence chunks)
# ----------------------------------------------------------------------------
def _attention_kernel(q_ref, k_ref, v_ref, mask_ref,     # inputs
                      ctx_ref, attn_ref,                  # outputs
                      m_sc, l_sc, acc_sc):                # VMEM scratch
    t = pl.program_id(1)
    t_blk = k_ref.shape[1]
    d_k = q_ref.shape[1]
    scale = 1.0 / (d_k ** 0.5)

    @pl.when(t == 0)
    def _():
        m_sc[...] = jnp.full(m_sc.shape, -jnp.inf, jnp.float32)
        l_sc[...] = jnp.zeros(l_sc.shape, jnp.float32)
        acc_sc[...] = jnp.zeros(acc_sc.shape, jnp.float32)

    q = q_ref[...]                        # (b_blk, Dk)
    k = k_ref[...]                        # (b_blk, t_blk, Dk)
    v = v_ref[...]                        # (b_blk, t_blk, Dv)
    msk = mask_ref[...]                   # (b_blk, t_blk) int32, nonzero == masked

    # energy = bmm(key, query); mask with -1e9; then scale by 1/sqrt(d_k)  (torch order)
    e = jnp.einsum('bqd,bkd->bqk', q[:, None, :], k,
                   preferred_element_type=jnp.float32)[:, 0, :]        # (b_blk, t_blk)
    e = jnp.where(msk != 0, jnp.float32(-1e9), e)
    e = e * scale

    # stash scaled logits into the resident attention-output block (used as scratch)
    off = pl.multiple_of(t * t_blk, t_blk)
    attn_ref[:, pl.ds(off, t_blk)] = e

    # online-softmax accumulation of the context
    m_prev = m_sc[...]                                                  # (b_blk, 1)
    m_new = jnp.maximum(m_prev, e.max(axis=-1, keepdims=True))
    alpha = jnp.exp(m_prev - m_new)
    p = jnp.exp(e - m_new)                                              # (b_blk, t_blk)
    l_sc[...] = alpha * l_sc[...] + p.sum(axis=-1, keepdims=True)
    pv = jnp.einsum('bqk,bkd->bqd', p[:, None, :], v,
                    preferred_element_type=jnp.float32)[:, 0, :]        # (b_blk, Dv)
    acc_sc[...] = alpha * acc_sc[...] + pv
    m_sc[...] = m_new

    # finalize: normalize context and re-normalize the stored logits into attention
    @pl.when(t == pl.num_programs(1) - 1)
    def _():
        inv_l = 1.0 / l_sc[...]
        ctx_ref[...] = (acc_sc[...] * inv_l).astype(ctx_ref.dtype)
        attn_ref[...] = (jnp.exp(attn_ref[...] - m_sc[...]) * inv_l).astype(attn_ref.dtype)


# ----------------------------------------------------------------------------
# wrapper: padding to (8, 128)-aligned tiles + pallas_call
# ----------------------------------------------------------------------------
def attention_pallas(query, key, value, mask, *, b_blk=8, t_blk=128):
    """query: (B, Dk) f32, key: (B, T, Dk), value: (B, T, Dv),
    mask: (B, T) bool with True == padded (masked-out) position.
    Returns (context (B, Dv), attention (B, T))."""
    B, T, Dk = key.shape
    Dv = value.shape[-1]

    b_blk = _round_up(max(b_blk, 8), 8)
    t_blk = _round_up(max(t_blk, 128), 128)
    t_blk = min(t_blk, _round_up(T, 128))
    Bp = _round_up(B, b_blk)
    Tp = _round_up(T, t_blk)

    pad_b, pad_t = Bp - B, Tp - T
    qp = jnp.pad(query, ((0, pad_b), (0, 0)))
    kp = jnp.pad(key, ((0, pad_b), (0, pad_t), (0, 0)))
    vp = jnp.pad(value, ((0, pad_b), (0, pad_t), (0, 0)))
    mp = jnp.pad(mask.astype(jnp.int32), ((0, pad_b), (0, pad_t)), constant_values=1)

    grid = (Bp // b_blk, Tp // t_blk)

    ctx, attn = pl.pallas_call(
        _attention_kernel,
        grid=grid,
        in_specs=[
            pl.BlockSpec((b_blk, Dk), lambda b, t: (b, 0)),
            pl.BlockSpec((b_blk, t_blk, Dk), lambda b, t: (b, t, 0)),
            pl.BlockSpec((b_blk, t_blk, Dv), lambda b, t: (b, t, 0)),
            pl.BlockSpec((b_blk, t_blk), lambda b, t: (b, t)),
        ],
        out_specs=(
            pl.BlockSpec((b_blk, Dv), lambda b, t: (b, 0)),   # resident across t
            pl.BlockSpec((b_blk, Tp), lambda b, t: (b, 0)),   # resident across t
        ),
        out_shape=(
            jax.ShapeDtypeStruct((Bp, Dv), query.dtype),
            jax.ShapeDtypeStruct((Bp, Tp), query.dtype),
        ),
        scratch_shapes=[
            pltpu.VMEM((b_blk, 1), jnp.float32),   # running max
            pltpu.VMEM((b_blk, 1), jnp.float32),   # running sum
            pltpu.VMEM((b_blk, Dv), jnp.float32),  # context accumulator
        ],
        compiler_params=pltpu.CompilerParams(
            dimension_semantics=("parallel", "arbitrary")),
    )(qp, kp, vp, mp)

    return ctx[:B], attn[:B, :T]


# ----------------------------------------------------------------------------
# pure-JAX reference (mirrors the PyTorch forward exactly)
# ----------------------------------------------------------------------------
def _attention_ref(query, key, value, mask):
    energy = jnp.einsum('btd,bd->bt', key, query)
    energy = jnp.where(mask, -1e9, energy)
    attention = jax.nn.softmax(energy / (key.shape[-1] ** 0.5), axis=1)
    context = jnp.einsum('bt,btd->bd', attention, value)
    return context, attention


if __name__ == "__main__":
    B, T, D = 16, 256, 128   # d_k == d_v == d_q == D

    root = jax.random.PRNGKey(0)
    kq, kk, kv, kl = jax.random.split(root, 4)
    query = jax.random.normal(kq, (B, D), jnp.float32)
    key = jax.random.normal(kk, (B, T, D), jnp.float32)
    value = jax.random.normal(kv, (B, T, D), jnp.float32)
    lens = jax.random.randint(kl, (B,), minval=T // 4, maxval=T + 1)
    mask = jnp.arange(T)[None, :] >= lens[:, None]   # True == padded position

    ctx, attn = attention_pallas(query, key, value, mask, b_blk=8, t_blk=128)
    jax.block_until_ready((ctx, attn))

    ctx_exp, attn_exp = _attention_ref(query, key, value, mask)
    assert ctx.shape == (B, D) and attn.shape == (B, T)
    np.testing.assert_allclose(np.asarray(ctx), np.asarray(ctx_exp), rtol=2e-5, atol=2e-5)
    np.testing.assert_allclose(np.asarray(attn), np.asarray(attn_exp), rtol=2e-5, atol=2e-5)
    print("KERNEL_OK")
</pallas_src>

<mosaic_0001>
module attributes {stable_mosaic.version = 11 : i64} {
  func.func @_attention_kernel(%arg0: i32, %arg1: i32, %arg2: memref<8x128xf32, #tpu.memory_space<vmem>>, %arg3: memref<8x128x128xf32, #tpu.memory_space<vmem>>, %arg4: memref<8x128x128xf32, #tpu.memory_space<vmem>>, %arg5: memref<8x128xi32, #tpu.memory_space<vmem>>, %arg6: memref<8x128xf32, #tpu.memory_space<vmem>>, %arg7: memref<8x256xf32, #tpu.memory_space<vmem>>, %arg8: memref<8x1xf32, #tpu.memory_space<vmem>>, %arg9: memref<8x1xf32, #tpu.memory_space<vmem>>, %arg10: memref<8x128xf32, #tpu.memory_space<vmem>>) attributes {dimension_semantics = [#tpu.dimension_semantics<parallel>, #tpu.dimension_semantics<arbitrary>], iteration_bounds = array<i64: 2, 2>, scalar_prefetch = 0 : i64, scratch_operands = 3 : i64, tpu.core_type = #tpu.core_type<tc>, window_params = [{transform_indices = @transform_0, window_bounds = array<i64: 8, 128>}, {transform_indices = @transform_1, window_bounds = array<i64: 8, 128, 128>}, {transform_indices = @transform_2, window_bounds = array<i64: 8, 128, 128>}, {transform_indices = @transform_3, window_bounds = array<i64: 8, 128>}, {transform_indices = @transform_4, window_bounds = array<i64: 8, 128>}, {transform_indices = @transform_5, window_bounds = array<i64: 8, 256>}]} {
    %c0_i32 = arith.constant 0 : i32
    %0 = arith.cmpi eq, %arg1, %c0_i32 : i32
    %1 = arith.extui %0 : i1 to i32
    %c0_i32_0 = arith.constant 0 : i32
    %2 = arith.cmpi ne, %1, %c0_i32_0 : i32
    scf.if %2 {
      %cst_30 = arith.constant 0xFF800000 : f32
      %47 = vector.broadcast %cst_30 : f32 to vector<8x1xf32>
      %c0_31 = arith.constant 0 : index
      %c0_32 = arith.constant 0 : index
      %48 = vector.load %arg8[%c0_31, %c0_32] : memref<8x1xf32, #tpu.memory_space<vmem>>, vector<8x1xf32>
      tpu.vector_store %arg8[%c0_31, %c0_32], %47 {strides = array<i32>} : memref<8x1xf32, #tpu.memory_space<vmem>>, vector<8x1xf32>,
      %cst_33 = arith.constant 0.000000e+00 : f32
      %49 = vector.broadcast %cst_33 : f32 to vector<8x1xf32>
      %c0_34 = arith.constant 0 : index
      %c0_35 = arith.constant 0 : index
      %50 = vector.load %arg9[%c0_34, %c0_35] : memref<8x1xf32, #tpu.memory_space<vmem>>, vector<8x1xf32>
      tpu.vector_store %arg9[%c0_34, %c0_35], %49 {strides = array<i32>} : memref<8x1xf32, #tpu.memory_space<vmem>>, vector<8x1xf32>,
      %cst_36 = arith.constant 0.000000e+00 : f32
      %51 = vector.broadcast %cst_36 : f32 to vector<8x128xf32>
      %c0_37 = arith.constant 0 : index
      %c0_38 = arith.constant 0 : index
      %52 = vector.load %arg10[%c0_37, %c0_38] : memref<8x128xf32, #tpu.memory_space<vmem>>, vector<8x128xf32>
      tpu.vector_store %arg10[%c0_37, %c0_38], %51 {strides = array<i32>} : memref<8x128xf32, #tpu.memory_space<vmem>>, vector<8x128xf32>,
    } else {
    }
    %c0 = arith.constant 0 : index
    %c0_1 = arith.constant 0 : index
    %3 = vector.load %arg2[%c0, %c0_1] : memref<8x128xf32, #tpu.memory_space<vmem>>, vector<8x128xf32>
    %c0_2 = arith.constant 0 : index
    %c0_3 = arith.constant 0 : index
    %c0_4 = arith.constant 0 : index
    %4 = vector.load %arg3[%c0_2, %c0_3, %c0_4] : memref<8x128x128xf32, #tpu.memory_space<vmem>>, vector<8x128x128xf32>
    %c0_5 = arith.constant 0 : index
    %c0_6 = arith.constant 0 : index
    %c0_7 = arith.constant 0 : index
    %5 = vector.load %arg4[%c0_5, %c0_6, %c0_7] : memref<8x128x128xf32, #tpu.memory_space<vmem>>, vector<8x128x128xf32>
    %c0_8 = arith.constant 0 : index
    %c0_9 = arith.constant 0 : index
    %6 = vector.load %arg5[%c0_8, %c0_9] : memref<8x128xi32, #tpu.memory_space<vmem>>, vector<8x128xi32>
    %7 = vector.shape_cast %3 : vector<8x128xf32> to vector<8x1x128xf32>
    "tpu.trace_start"() <{level = 10 : i32, message = "bqd,bkd->bqk"}> : () -> ()
    %cst = arith.constant dense<0.000000e+00> : vector<8x1x128xf32>
    %8 = tpu.matmul %7, %4, %cst {dimension_numbers = #tpu.dot_dimension_numbers<[2], [2], [1], [1], [0, 0, 0, 1, 1, 1], [0], [0]>} : vector<8x1x128xf32>, vector<8x128x128xf32>, vector<8x1x128xf32> -> vector<8x1x128xf32>
    "tpu.trace_stop"() : () -> ()
    %9 = vector.shape_cast %8 : vector<8x1x128xf32> to vector<8x128xf32>
    %c0_i32_10 = arith.constant 0 : i32
    %10 = vector.broadcast %c0_i32_10 : i32 to vector<8x128xi32>
    %11 = arith.cmpi ne, %6, %10 : vector<8x128xi32>
    %cst_11 = arith.constant -1.000000e+09 : f32
    %12 = vector.broadcast %cst_11 : f32 to vector<8x128xf32>
    %13 = arith.select %11, %12, %9 : vector<8x128xi1>, vector<8x128xf32>
    %cst_12 = arith.constant 0.0883883461 : f32
    %14 = vector.broadcast %cst_12 : f32 to vector<8x128xf32>
    %15 = arith.mulf %13, %14 : vector<8x128xf32>
    %c128_i32 = arith.constant 128 : i32
    %16 = arith.muli %arg1, %c128_i32 : i32
    %17 = tpu.assume_multiple %16, 128 : i32
    %c0_13 = arith.constant 0 : index
    %18 = arith.index_cast %17 : i32 to index
    %19 = vector.load %arg7[%c0_13, %18] : memref<8x256xf32, #tpu.memory_space<vmem>>, vector<8x128xf32>
    tpu.vector_store %arg7[%c0_13, %18], %15 {strides = array<i32>} : memref<8x256xf32, #tpu.memory_space<vmem>>, vector<8x128xf32>,
    %c0_14 = arith.constant 0 : index
    %c0_15 = arith.constant 0 : index
    %20 = vector.load %arg8[%c0_14, %c0_15] : memref<8x1xf32, #tpu.memory_space<vmem>>, vector<8x1xf32>
    %cst_16 = arith.constant dense<0xFF800000> : vector<8xf32>
    %21 = vector.multi_reduction <maximumf>, %15, %cst_16 [1] : vector<8x128xf32> to vector<8xf32>
    %22 = vector.shape_cast %21 : vector<8xf32> to vector<8x1xf32>
    %23 = arith.maximumf %20, %22 : vector<8x1xf32>
    %24 = arith.subf %20, %23 : vector<8x1xf32>
    %25 = math.exp %24 : vector<8x1xf32>
    %26 = vector.broadcast %23 : vector<8x1xf32> to vector<8x128xf32>
    %27 = arith.subf %15, %26 : vector<8x128xf32>
    %28 = math.exp %27 : vector<8x128xf32>
    %c0_17 = arith.constant 0 : index
    %c0_18 = arith.constant 0 : index
    %29 = vector.load %arg9[%c0_17, %c0_18] : memref<8x1xf32, #tpu.memory_space<vmem>>, vector<8x1xf32>
    %30 = arith.mulf %25, %29 : vector<8x1xf32>
    %cst_19 = arith.constant dense<0.000000e+00> : vector<8xf32>
    %31 = vector.multi_reduction <add>, %28, %cst_19 [1] : vector<8x128xf32> to vector<8xf32>
    %32 = vector.shape_cast %31 : vector<8xf32> to vector<8x1xf32>
    %33 = arith.addf %30, %32 : vector<8x1xf32>
    %c0_20 = arith.constant 0 : index
    %c0_21 = arith.constant 0 : index
    %34 = vector.load %arg9[%c0_20, %c0_21] : memref<8x1xf32, #tpu.memory_space<vmem>>, vector<8x1xf32>
    tpu.vector_store %arg9[%c0_20, %c0_21], %33 {strides = array<i32>} : memref<8x1xf32, #tpu.memory_space<vmem>>, vector<8x1xf32>,
    %35 = vector.shape_cast %28 : vector<8x128xf32> to vector<8x1x128xf32>
    "tpu.trace_start"() <{level = 10 : i32, message = "bqk,bkd->bqd"}> : () -> ()
    %cst_22 = arith.constant dense<0.000000e+00> : vector<8x1x128xf32>
    %36 = tpu.matmul %35, %5, %cst_22 {dimension_numbers = #tpu.dot_dimension_numbers<[2], [1], [1], [2], [0, 0, 0, 1, 1, 2], [0], [0]>} : vector<8x1x128xf32>, vector<8x128x128xf32>, vector<8x1x128xf32> -> vector<8x1x128xf32>
    "tpu.trace_stop"() : () -> ()
    %37 = vector.shape_cast %36 : vector<8x1x128xf32> to vector<8x128xf32>
    %c0_23 = arith.constant 0 : index
    %c0_24 = arith.constant 0 : index
    %38 = vector.load %arg10[%c0_23, %c0_24] : memref<8x128xf32, #tpu.memory_space<vmem>>, vector<8x128xf32>
    %39 = vector.broadcast %25 : vector<8x1xf32> to vector<8x128xf32>
    %40 = arith.mulf %39, %38 : vector<8x128xf32>
    %41 = arith.addf %40, %37 : vector<8x128xf32>
    %c0_25 = arith.constant 0 : index
    %c0_26 = arith.constant 0 : index
    %42 = vector.load %arg10[%c0_25, %c0_26] : memref<8x128xf32, #tpu.memory_space<vmem>>, vector<8x128xf32>
    tpu.vector_store %arg10[%c0_25, %c0_26], %41 {strides = array<i32>} : memref<8x128xf32, #tpu.memory_space<vmem>>, vector<8x128xf32>,
    %c0_27 = arith.constant 0 : index
    %c0_28 = arith.constant 0 : index
    %43 = vector.load %arg8[%c0_27, %c0_28] : memref<8x1xf32, #tpu.memory_space<vmem>>, vector<8x1xf32>
    tpu.vector_store %arg8[%c0_27, %c0_28], %23 {strides = array<i32>} : memref<8x1xf32, #tpu.memory_space<vmem>>, vector<8x1xf32>,
    %c1_i32 = arith.constant 1 : i32
    %44 = arith.cmpi eq, %arg1, %c1_i32 : i32
    %45 = arith.extui %44 : i1 to i32
    %c0_i32_29 = arith.constant 0 : i32
    %46 = arith.cmpi ne, %45, %c0_i32_29 : i32
    scf.if %46 {
      %c0_30 = arith.constant 0 : index
      %c0_31 = arith.constant 0 : index
      %47 = vector.load %arg9[%c0_30, %c0_31] : memref<8x1xf32, #tpu.memory_space<vmem>>, vector<8x1xf32>
      %cst_32 = arith.constant 1.000000e+00 : f32
      %48 = vector.broadcast %cst_32 : f32 to vector<8x1xf32>
      %49 = arith.divf %48, %47 : vector<8x1xf32>
      %c0_33 = arith.constant 0 : index
      %c0_34 = arith.constant 0 : index
      %50 = vector.load %arg10[%c0_33, %c0_34] : memref<8x128xf32, #tpu.memory_space<vmem>>, vector<8x128xf32>
      %51 = vector.broadcast %49 : vector<8x1xf32> to vector<8x128xf32>
      %52 = arith.mulf %50, %51 : vector<8x128xf32>
      %c0_35 = arith.constant 0 : index
      %c0_36 = arith.constant 0 : index
      %53 = vector.load %arg6[%c0_35, %c0_36] : memref<8x128xf32, #tpu.memory_space<vmem>>, vector<8x128xf32>
      tpu.vector_store %arg6[%c0_35, %c0_36], %52 {strides = array<i32>} : memref<8x128xf32, #tpu.memory_space<vmem>>, vector<8x128xf32>,
      %c0_37 = arith.constant 0 : index
      %c0_38 = arith.constant 0 : index
      %54 = vector.load %arg7[%c0_37, %c0_38] : memref<8x256xf32, #tpu.memory_space<vmem>>, vector<8x256xf32>
      %c0_39 = arith.constant 0 : index
      %c0_40 = arith.constant 0 : index
      %55 = vector.load %arg8[%c0_39, %c0_40] : memref<8x1xf32, #tpu.memory_space<vmem>>, vector<8x1xf32>
      %56 = vector.broadcast %55 : vector<8x1xf32> to vector<8x256xf32>
      %57 = arith.subf %54, %56 : vector<8x256xf32>
      %58 = math.exp %57 : vector<8x256xf32>
      %59 = vector.broadcast %49 : vector<8x1xf32> to vector<8x256xf32>
      %60 = arith.mulf %58, %59 : vector<8x256xf32>
      %c0_41 = arith.constant 0 : index
      %c0_42 = arith.constant 0 : index
      %61 = vector.load %arg7[%c0_41, %c0_42] : memref<8x256xf32, #tpu.memory_space<vmem>>, vector<8x256xf32>
      tpu.vector_store %arg7[%c0_41, %c0_42], %60 {strides = array<i32>} : memref<8x256xf32, #tpu.memory_space<vmem>>, vector<8x256xf32>,
    } else {
    }
    return
  }
  func.func @transform_0(%arg0: i32, %arg1: i32) -> (i32, i32) {
    %c0_i32 = arith.constant 0 : i32
    %c0_i32_0 = arith.constant 0 : i32
    return %arg0, %c0_i32 : i32, i32
  }
  func.func @transform_1(%arg0: i32, %arg1: i32) -> (i32, i32, i32) {
    %c0_i32 = arith.constant 0 : i32
    %c0_i32_0 = arith.constant 0 : i32
    return %arg0, %arg1, %c0_i32 : i32, i32, i32
  }
  func.func @transform_2(%arg0: i32, %arg1: i32) -> (i32, i32, i32) {
    %c0_i32 = arith.constant 0 : i32
    %c0_i32_0 = arith.constant 0 : i32
    return %arg0, %arg1, %c0_i32 : i32, i32, i32
  }
  func.func @transform_3(%arg0: i32, %arg1: i32) -> (i32, i32) {
    %c0_i32 = arith.constant 0 : i32
    return %arg0, %arg1 : i32, i32
  }
  func.func @transform_4(%arg0: i32, %arg1: i32) -> (i32, i32) {
    %c0_i32 = arith.constant 0 : i32
    %c0_i32_0 = arith.constant 0 : i32
    return %arg0, %c0_i32 : i32, i32
  }
  func.func @transform_5(%arg0: i32, %arg1: i32) -> (i32, i32) {
    %c0_i32 = arith.constant 0 : i32
    %c0_i32_0 = arith.constant 0 : i32
    return %arg0, %c0_i32 : i32, i32
  }
}

</mosaic_0001>

<llo_original>
// kernel: tpu_custom_call.1
$region0: #{tpu_custom_call.1}
  #allocation0 [shape = 'u32[]', space=smem, size = 0x4, offset = 0x4, fixed_abs, tag = 'smem constant byte address 0x4 - core index']
  #allocation1 [shape = 'u32[72,128]{1,0:T(1,128)}', space=vmem, size = 0x9000, scoped, tag = 'internal scratch']
  #allocation2 [shape = 'f32[8,1]{1,0:T(8,128)}', space=vmem, size = 0x1000, scoped, tag = 'scratch operand']
  #allocation3 [shape = 'f32[8,1]{1,0:T(8,128)}', space=vmem, size = 0x1000, scoped, tag = 'scratch operand']
  #allocation4 [shape = 'f32[8,128]{1,0:T(8,128)}', space=vmem, size = 0x1000, scoped, tag = 'scratch operand']
  #allocation16 [shape = 's32[]', space=sflag, size = 0x4, offset = 0, fixed_abs, tag = 'sflag constant byte address 0x0 - dummy sync flag']
  #allocation18 [shape = 's32[]', space=sflag, size = 0x4, offset = 0, fixed_abs, tag = 'sflag constant byte address 0x0 - dummy sync flag']
  %s0 = inlined_call_operand.hbm [shape: f32[16,128], index: 0, kind: input, shape index: {}]
  %s1 = inlined_call_operand.hbm [shape: f32[16,256,128], index: 1, kind: input, shape index: {}]
  %s2 = inlined_call_operand.hbm [shape: f32[16,256,128], index: 2, kind: input, shape index: {}]
  %s3 = inlined_call_operand.hbm [shape: s32[16,256], index: 3, kind: input, shape index: {}]
  %s4 = inlined_call_operand.hbm [shape: f32[16,128], index: 4, kind: output, shape index: {0}]
  %s5 = inlined_call_operand.hbm [shape: f32[16,256], index: 5, kind: output, shape index: {1}]
  %6 = xla_tuple %s4, %s5
  %s7 = sld [smem:[#allocation0]]
  $region81: #{tpu_custom_call.1} parent=0
    _
  %s9 = ssub.s32 1, %s7
  %s10 = scalar_select 0, %s9, %s7
  $region1: #{tpu_custom_call.1} parent=0
    #allocation5 [shape = 'u8[8192]{0}', space=vmem, size = 0x2000, scoped, tag = 'input window, operand 0']
    #allocation6 [shape = 's32[2]{0}', space=sflag, size = 0x8, scoped, tag = 'scoped memory for tpu_custom_call.1']
    #allocation7 [shape = 's32[2]{0}', space=sflag, size = 0x8, scoped, tag = 'scoped memory for tpu_custom_call.1']
    #allocation8 [shape = 'u8[1048576]{0}', space=vmem, size = 0x100000, scoped, tag = 'input window, operand 1']
    #allocation9 [shape = 's32[2]{0}', space=sflag, size = 0x8, scoped, tag = 'scoped memory for tpu_custom_call.1']
    #allocation10 [shape = 'u8[1048576]{0}', space=vmem, size = 0x100000, scoped, tag = 'input window, operand 2']
    #allocation11 [shape = 'u8[8192]{0}', space=vmem, size = 0x2000, scoped, tag = 'input window, operand 3']
    #allocation12 [shape = 's32[2]{0}', space=sflag, size = 0x8, scoped, tag = 'scoped memory for tpu_custom_call.1']
    #allocation13 [shape = 'u8[8192]{0}', space=vmem, size = 0x2000, scoped, tag = 'output window, operand 0']
    #allocation14 [shape = 'u8[16384]{0}', space=vmem, size = 0x4000, scoped, tag = 'output window, operand 1']
    #allocation15 [shape = 's32[2]{0}', space=sflag, size = 0x8, scoped, tag = 'scoped memory for tpu_custom_call.1']
    %11 = vsyncpa [#allocation6], 0
    %s12 = scalar_lea.sflag [#allocation6], 1
    %13 = vsyncpa %s12, 0
    %14 = vsyncpa [#allocation9], 0
    %s15 = scalar_lea.sflag [#allocation9], 1
    %16 = vsyncpa %s15, 0
    %17 = vsyncpa [#allocation12], 0
    %s18 = scalar_lea.sflag [#allocation12], 1
    %19 = vsyncpa %s18, 0
    %20 = vsyncpa [#allocation7], 0
    %s21 = scalar_lea.sflag [#allocation7], 1
    %22 = vsyncpa %s21, 0
    %23 = vsyncpa [#allocation15], 0
    %s24 = scalar_lea.sflag [#allocation15], 1
    %25 = vsyncpa %s24, 0
    loop: start=0, step=1, limit=6
    $region2: #{tpu_custom_call.1} parent=1 // loop_pre_header
      _
    $region3: #{tpu_custom_call.1} parent=1 // loop_header
      %s27 = sphi 0, %s31
      %p28 = scmp.ge.s32.totalorder %s27, 6
      %s34 = sphi 0, %s46
      %s35 = sphi 0, %s42
      %s36 = sphi 0, %s34
      %s37 = sphi 0, %s35
      %s38 = sphi 0, %s36
      %s39 = sphi 0, %s37
      %s49 = sphi 0, %s51
      %s52 = sphi 0, %s49
      %s53 = sphi 0, %s52
      %s69 = sphi 0, %s53
      %s77 = sphi 0, %s79
      %s80 = sphi 0, %s77
      %s81 = sphi 0, %s80
      %s97 = sphi 0, %s81
      %s105 = sphi 0, %s107
      %s108 = sphi 0, %s105
      %s109 = sphi 0, %s108
      %s125 = sphi 0, %s109
      %s133 = sphi 0, %s135
      %s136 = sphi 0, %s133
      %s137 = sphi 0, %s136
      %s153 = sphi 0, %s137
      %s159 = sphi 0, %s161
      %s162 = sphi 0, %s159
      %s163 = sphi 0, %s162
      %s179 = sphi 0, %s163
      %s185 = sphi 0, %s187
      %s188 = sphi 0, %s185
      %s189 = sphi 0, %s188
      %s205 = sphi 0, %s189
    $region4: #{tpu_custom_call.1} parent=1 // loop_header_branch
      %30 = sbr.rel (%p28) target = $region8
    $region5: #{tpu_custom_call.1} parent=1 // loop_body
      %s32 = ssub.s32 %s27, 1
      %s33 = ssub.s32 %s27, 2
      %s40 = sadd.s32 1, %s35
      %p41 = scmp.ge.s32.totalorder %s40, 2
      %s42 = scalar_select %p41, 0, %s40
      %s43 = sadd.s32 1, %s34
      %s44 = scalar_select %p41, %s43, %s34
      %p45 = scmp.ge.s32.totalorder %s44, 2
      %s46 = scalar_select %p45, 0, %s44
      %s47 = ssub.s32 %s34, %s46
      %p48 = scmp.eq.s32.totalorder %s47, 0
      %s50 = sadd.s32 %s49, 1
      %s51 = scalar_select %p48, %s49, %s50
      %p54 = pneg %p48
      %p55 = scmp.eq.s32.totalorder %s27, 3
      %p56 = por %p54, %p55
      %p57 = scmp.ne.s32.totalorder %s49, %s52
      %p58 = scmp.eq.s32.totalorder %s27, 0
      %p59 = por %p57, %p58
      %p60 = scmp.ne.s32.totalorder %s49, %s52
      %p61 = scmp.eq.s32.totalorder %s32, 3
      %p62 = por %p60, %p61
      %p63 = scmp.ne.s32.totalorder %s52, %s53
      %p64 = scmp.eq.s32.totalorder %s32, 0
      %p65 = por %p63, %p64
      %p66 = scmp.ne.s32.totalorder %s52, %s53
      %p67 = scmp.eq.s32.totalorder %s33, 3
      %p68 = por %p66, %p67
      %p70 = scmp.ne.s32.totalorder %s53, %s69
      %p71 = scmp.eq.s32.totalorder %s33, 0
      %p72 = por %p70, %p71
      %s73 = ssub.s32 %s34, %s46
      %s74 = ssub.s32 %s35, %s42
      %s75 = sor.u32 %s73, %s74
      %p76 = scmp.eq.s32.totalorder %s75, 0
      %s78 = sadd.s32 %s77, 1
      %s79 = scalar_select %p76, %s77, %s78
      %p82 = pneg %p76
      %p83 = scmp.eq.s32.totalorder %s27, 3
      %p84 = por %p82, %p83
      %p85 = scmp.ne.s32.totalorder %s77, %s80
      %p86 = scmp.eq.s32.totalorder %s27, 0
      %p87 = por %p85, %p86
      %p88 = scmp.ne.s32.totalorder %s77, %s80
      %p89 = scmp.eq.s32.totalorder %s32, 3
      %p90 = por %p88, %p89
      %p91 = scmp.ne.s32.totalorder %s80, %s81
      %p92 = scmp.eq.s32.totalorder %s32, 0
      %p93 = por %p91, %p92
      %p94 = scmp.ne.s32.totalorder %s80, %s81
      %p95 = scmp.eq.s32.totalorder %s33, 3
      %p96 = por %p94, %p95
      %p98 = scmp.ne.s32.totalorder %s81, %s97
      %p99 = scmp.eq.s32.totalorder %s33, 0
      %p100 = por %p98, %p99
      %s101 = ssub.s32 %s34, %s46
      %s102 = ssub.s32 %s35, %s42
      %s103 = sor.u32 %s101, %s102
      %p104 = scmp.eq.s32.totalorder %s103, 0
      %s106 = sadd.s32 %s105, 1
      %s107 = scalar_select %p104, %s105, %s106
      %p110 = pneg %p104
      %p111 = scmp.eq.s32.totalorder %s27, 3
      %p112 = por %p110, %p111
      %p113 = scmp.ne.s32.totalorder %s105, %s108
      %p114 = scmp.eq.s32.totalorder %s27, 0
      %p115 = por %p113, %p114
      %p116 = scmp.ne.s32.totalorder %s105, %s108
      %p117 = scmp.eq.s32.totalorder %s32, 3
      %p118 = por %p116, %p117
      %p119 = scmp.ne.s32.totalorder %s108, %s109
      %p120 = scmp.eq.s32.totalorder %s32, 0
      %p121 = por %p119, %p120
      %p122 = scmp.ne.s32.totalorder %s108, %s109
      %p123 = scmp.eq.s32.totalorder %s33, 3
      %p124 = por %p122, %p123
      %p126 = scmp.ne.s32.totalorder %s109, %s125
      %p127 = scmp.eq.s32.totalorder %s33, 0
      %p128 = por %p126, %p127
      %s129 = ssub.s32 %s34, %s46
      %s130 = ssub.s32 %s35, %s42
      %s131 = sor.u32 %s129, %s130
      %p132 = scmp.eq.s32.totalorder %s131, 0
      %s134 = sadd.s32 %s133, 1
      %s135 = scalar_select %p132, %s133, %s134
      %p138 = pneg %p132
      %p139 = scmp.eq.s32.totalorder %s27, 3
      %p140 = por %p138, %p139
      %p141 = scmp.ne.s32.totalorder %s133, %s136
      %p142 = scmp.eq.s32.totalorder %s27, 0
      %p143 = por %p141, %p142
      %p144 = scmp.ne.s32.totalorder %s133, %s136
      %p145 = scmp.eq.s32.totalorder %s32, 3
      %p146 = por %p144, %p145
      %p147 = scmp.ne.s32.totalorder %s136, %s137
      %p148 = scmp.eq.s32.totalorder %s32, 0
      %p149 = por %p147, %p148
      %p150 = scmp.ne.s32.totalorder %s136, %s137
      %p151 = scmp.eq.s32.totalorder %s33, 3
      %p152 = por %p150, %p151
      %p154 = scmp.ne.s32.totalorder %s137, %s153
      %p155 = scmp.eq.s32.totalorder %s33, 0
      %p156 = por %p154, %p155
      %s157 = ssub.s32 %s34, %s46
      %p158 = scmp.eq.s32.totalorder %s157, 0
      %s160 = sadd.s32 %s159, 1
      %s161 = scalar_select %p158, %s159, %s160
      %p164 = pneg %p158
      %p165 = scmp.eq.s32.totalorder %s27, 3
      %p166 = por %p164, %p165
      %p167 = scmp.ne.s32.totalorder %s159, %s162
      %p168 = scmp.eq.s32.totalorder %s27, 0
      %p169 = por %p167, %p168
      %p170 = scmp.ne.s32.totalorder %s159, %s162
      %p171 = scmp.eq.s32.totalorder %s32, 3
      %p172 = por %p170, %p171
      %p173 = scmp.ne.s32.totalorder %s162, %s163
      %p174 = scmp.eq.s32.totalorder %s32, 0
      %p175 = por %p173, %p174
      %p176 = scmp.ne.s32.totalorder %s162, %s163
      %p177 = scmp.eq.s32.totalorder %s33, 3
      %p178 = por %p176, %p177
      %p180 = scmp.ne.s32.totalorder %s163, %s179
      %p181 = scmp.eq.s32.totalorder %s33, 0
      %p182 = por %p180, %p181
      %s183 = ssub.s32 %s34, %s46
      %p184 = scmp.eq.s32.totalorder %s183, 0
      %s186 = sadd.s32 %s185, 1
      %s187 = scalar_select %p184, %s185, %s186
      %p190 = pneg %p184
      %p191 = scmp.eq.s32.totalorder %s27, 3
      %p192 = por %p190, %p191
      %p193 = scmp.ne.s32.totalorder %s185, %s188
      %p194 = scmp.eq.s32.totalorder %s27, 0
      %p195 = por %p193, %p194
      %p196 = scmp.ne.s32.totalorder %s185, %s188
      %p197 = scmp.eq.s32.totalorder %s32, 3
      %p198 = por %p196, %p197
      %p199 = scmp.ne.s32.totalorder %s188, %s189
      %p200 = scmp.eq.s32.totalorder %s32, 0
      %p201 = por %p199, %p200
      %p202 = scmp.ne.s32.totalorder %s188, %s189
      %p203 = scmp.eq.s32.totalorder %s33, 3
      %p204 = por %p202, %p203
      %p206 = scmp.ne.s32.totalorder %s189, %s205
      %p207 = scmp.eq.s32.totalorder %s33, 0
      %p208 = por %p206, %p207
      %p209 = scmp.le.s32.totalorder 1, %s27
      %p210 = scmp.lt.s32.totalorder %s27, 5
      %p211 = pnand %p209, %p210
      %p212 = pneg %p211
      // Predicated region
      $region9: #{tpu_custom_call.1} parent=5 // pred_check
        _
      $region10: #{tpu_custom_call.1} parent=5 // pred_check_branch
        %214 = sbr.rel (%p211) target = $region12
      $region11: #{tpu_custom_call.1} parent=5 // pred_region
        %s215 = ssub.s32 %s27, 1
      $region12: #{tpu_custom_call.1} parent=5 // pred_fallthru
        _
      %p216 = scmp.lt.s32.totalorder %s27, 4
      // Predicated region
      $region13: #{tpu_custom_call.1} parent=5 // pred_check
        %p217 = pneg %p216
      $region14: #{tpu_custom_call.1} parent=5 // pred_check_branch
        %219 = sbr.rel (%p217) target = $region16
      $region15: #{tpu_custom_call.1} parent=5 // pred_region
        // Predicated region
        $region17: #{tpu_custom_call.1} parent=15 // pred_check
          %p220 = pneg %p59
        $region18: #{tpu_custom_call.1} parent=15 // pred_check_branch
          %222 = sbr.rel (%p220) target = $region20
        $region19: #{tpu_custom_call.1} parent=15 // pred_region
          %s223 = sand.u32 %s49, 1
          %s224 = scalar_lea.sflag [#allocation6], %s223
          %s225 = sand.u32 %s49, 1
          %s226 = smul.addr %s225, 8
          %s227 = scalar_lea.vmem [#allocation5], %s226
          %229 = vsyncadd %s224, 0
          %s230 = smul.addr %s34, 8
          %s231 = scalar_lea.hbm %s0, %s230
          %s233 = sshll.u32 %s231, 4
          %s234 = int_to_ptr.hbm [resolvable:$true] %s233
          %s235 = sshll.u32 %s227, 4
          %s236 = int_to_ptr.vmem [resolvable:$true] %s235
          %238 = dma.hbm_to_vmem [thread:$0]  %s234, 128, %s236, %s224
        $region20: #{tpu_custom_call.1} parent=15 // pred_fallthru
          _
        // Predicated region
        $region21: #{tpu_custom_call.1} parent=15 // pred_check
          %p239 = pneg %p87
        $region22: #{tpu_custom_call.1} parent=15 // pred_check_branch
          %241 = sbr.rel (%p239) target = $region24
        $region23: #{tpu_custom_call.1} parent=15 // pred_region
          #allocation17 [shape = 'u32[6]{0}', space=smem, size = 0x18, scoped, tag = 'DMA stride descriptor']
          %s242 = sand.u32 %s27, 1
          %s243 = scalar_lea.sflag [#allocation9], %s242
          %s244 = sand.u32 %s77, 1
          %s245 = smul.addr %s244, 1024
          %s246 = scalar_lea.vmem [#allocation8], %s245
          %s247 = smul.u32 8, %s34
          %s248 = smul.u32 16, %s35
          %250 = vsyncadd %s243, 0
          %s251 = smul.addr %s247, 32
          %s252 = sadd.s32 %s248, %s251
          %s253 = smul.addr %s252, 8
          %s254 = scalar_lea.hbm %s1, %s253
          %s256 = sshll.u32 1, 14
          %s257 = sxor.u32 4294967295, %s256
          %s259 = sld [smem:[#allocation0]]
          %s260 = sadd.s32 2, %s259
          %s262 = sshll.u32 7, 26
          %s263 = sxor.u32 4294967295, %s262
          %s264 = sand.u32 0, %s263
          %s265 = sshll.u32 %s260, 26
          %s266 = sor.u32 %s264, %s265
          %s267 = sshll.u32 %s254, 4
          %s268 = int_to_ptr.hbm [resolvable:$true] %s267
          %s269 = sshll.u32 %s246, 4
          %s270 = int_to_ptr.vmem [resolvable:$true] %s269
          %276 = sst [smem:[#allocation17]] 4096
          %s277 = scalar_lea.smem [#allocation17], 1
          %278 = sst [smem:[%s277]] 2048
          %s279 = scalar_lea.smem [#allocation17], 2
          %280 = sst [smem:[%s279]] 16
          %s281 = scalar_lea.smem [#allocation17], 3
          %282 = sst [smem:[%s281]] 128
          %s283 = scalar_lea.smem [#allocation17], 4
          %284 = sst [smem:[%s283]] 128
          %s285 = scalar_lea.smem [#allocation17], 5
          %286 = sst [smem:[%s285]] 8
          %288 = dma.general %s268, 16384, %s270, %s243, [#allocation16], [#allocation17], %s266, 0
        $region24: #{tpu_custom_call.1} parent=15 // pred_fallthru
          _
        // Predicated region
        $region25: #{tpu_custom_call.1} parent=15 // pred_check
          %p289 = pneg %p115
        $region26: #{tpu_custom_call.1} parent=15 // pred_check_branch
          %291 = sbr.rel (%p289) target = $region28
        $region27: #{tpu_custom_call.1} parent=15 // pred_region
          #allocation19 [shape = 'u32[6]{0}', space=smem, size = 0x18, scoped, tag = 'DMA stride descriptor']
          %s292 = sand.u32 %s27, 1
          %s293 = scalar_lea.sflag [#allocation9], %s292
          %s294 = sand.u32 %s105, 1
          %s295 = smul.addr %s294, 1024
          %s296 = scalar_lea.vmem [#allocation10], %s295
          %s297 = smul.u32 8, %s34
          %s298 = smul.u32 16, %s35
          %300 = vsyncadd %s293, 0
          %s301 = smul.addr %s297, 32
          %s302 = sadd.s32 %s298, %s301
          %s303 = smul.addr %s302, 8
          %s304 = scalar_lea.hbm %s2, %s303
          %s306 = sshll.u32 1, 14
          %s307 = sxor.u32 4294967295, %s306
          %s309 = sld [smem:[#allocation0]]
          %s310 = sadd.s32 2, %s309
          %s312 = sshll.u32 7, 26
          %s313 = sxor.u32 4294967295, %s312
          %s314 = sand.u32 0, %s313
          %s315 = sshll.u32 %s310, 26
          %s316 = sor.u32 %s314, %s315
          %s317 = sshll.u32 %s304, 4
          %s318 = int_to_ptr.hbm [resolvable:$true] %s317
          %s319 = sshll.u32 %s296, 4
          %s320 = int_to_ptr.vmem [resolvable:$true] %s319
          %326 = sst [smem:[#allocation19]] 4096
          %s327 = scalar_lea.smem [#allocation19], 1
          %328 = sst [smem:[%s327]] 2048
          %s329 = scalar_lea.smem [#allocation19], 2
          %330 = sst [smem:[%s329]] 16
          %s331 = scalar_lea.smem [#allocation19], 3
          %332 = sst [smem:[%s331]] 128
          %s333 = scalar_lea.smem [#allocation19], 4
          %334 = sst [smem:[%s333]] 128
          %s335 = scalar_lea.smem [#allocation19], 5
          %336 = sst [smem:[%s335]] 8
          %338 = dma.general %s318, 16384, %s320, %s293, [#allocation18], [#allocation19], %s316, 0
        $region28: #{tpu_custom_call.1} parent=15 // pred_fallthru
          _
        // Predicated region
        $region29: #{tpu_custom_call.1} parent=15 // pred_check
          %p339 = pneg %p143
        $region30: #{tpu_custom_call.1} parent=15 // pred_check_branch
          %341 = sbr.rel (%p339) target = $region32
        $region31: #{tpu_custom_call.1} parent=15 // pred_region
          %s342 = sand.u32 %s133, 1
          %s343 = scalar_lea.sflag [#allocation12], %s342
          %s344 = sand.u32 %s133, 1
          %s345 = smul.addr %s344, 8
          %s346 = scalar_lea.vmem [#allocation11], %s345
          %348 = vsyncadd %s343, 0
          %s349 = smul.addr %s34, 2
          %s350 = sadd.s32 %s35, %s349
          %s351 = smul.addr %s350, 8
          %s352 = scalar_lea.hbm %s3, %s351
          %s354 = sshll.u32 %s352, 4
          %s355 = int_to_ptr.hbm [resolvable:$true] %s354
          %s356 = sshll.u32 %s346, 4
          %s357 = int_to_ptr.vmem [resolvable:$true] %s356
          %359 = dma.hbm_to_vmem [thread:$0]  %s355, 128, %s357, %s343
        $region32: #{tpu_custom_call.1} parent=15 // pred_fallthru
          _
      $region16: #{tpu_custom_call.1} parent=5 // pred_fallthru
        _
      %p360 = scmp.le.s32.totalorder 1, %s27
      %p361 = scmp.lt.s32.totalorder %s27, 5
      %p362 = pnand %p360, %p361
      %p363 = pneg %p362
      // Predicated region
      $region33: #{tpu_custom_call.1} parent=5 // pred_check
        _
      $region34: #{tpu_custom_call.1} parent=5 // pred_check_branch
        %365 = sbr.rel (%p362) target = $region36
      $region35: #{tpu_custom_call.1} parent=5 // pred_region
        %s366 = ssub.s32 %s27, 1
        %s367 = sand.u32 %s52, 1
        %s368 = scalar_lea.sflag [#allocation6], %s367
        %s369 = sand.u32 %s52, 1
        %s370 = smul.addr %s369, 8
        %s371 = scalar_lea.vmem [#allocation5], %s370
        // Predicated region
        $region37: #{tpu_custom_call.1} parent=35 // pred_check
          %p372 = pneg %p65
        $region38: #{tpu_custom_call.1} parent=35 // pred_check_branch
          %374 = sbr.rel (%p372) target = $region40
        $region39: #{tpu_custom_call.1} parent=35 // pred_region
          %376 = dma.done %s368, 128
        $region40: #{tpu_custom_call.1} parent=35 // pred_fallthru
          _
        %s377 = sand.u32 %s32, 1
        %s378 = scalar_lea.sflag [#allocation9], %s377
        %s379 = sand.u32 %s80, 1
        %s380 = smul.addr %s379, 1024
        %s381 = scalar_lea.vmem [#allocation8], %s380
        // Predicated region
        $region41: #{tpu_custom_call.1} parent=35 // pred_check
          %p382 = pneg %p93
        $region42: #{tpu_custom_call.1} parent=35 // pred_check_branch
          %384 = sbr.rel (%p382) target = $region44
        $region43: #{tpu_custom_call.1} parent=35 // pred_region
          %386 = dma.done %s378, 16384
        $region44: #{tpu_custom_call.1} parent=35 // pred_fallthru
          _
        %s387 = sand.u32 %s32, 1
        %s388 = scalar_lea.sflag [#allocation9], %s387
        %s389 = sand.u32 %s108, 1
        %s390 = smul.addr %s389, 1024
        %s391 = scalar_lea.vmem [#allocation10], %s390
        // Predicated region
        $region45: #{tpu_custom_call.1} parent=35 // pred_check
          %p392 = pneg %p121
        $region46: #{tpu_custom_call.1} parent=35 // pred_check_branch
          %394 = sbr.rel (%p392) target = $region48
        $region47: #{tpu_custom_call.1} parent=35 // pred_region
          %396 = dma.done %s388, 16384
        $region48: #{tpu_custom_call.1} parent=35 // pred_fallthru
          _
        %s397 = sand.u32 %s136, 1
        %s398 = scalar_lea.sflag [#allocation12], %s397
        %s399 = sand.u32 %s136, 1
        %s400 = smul.addr %s399, 8
        %s401 = scalar_lea.vmem [#allocation11], %s400
        // Predicated region
        $region49: #{tpu_custom_call.1} parent=35 // pred_check
          %p402 = pneg %p149
        $region50: #{tpu_custom_call.1} parent=35 // pred_check_branch
          %404 = sbr.rel (%p402) target = $region52
        $region51: #{tpu_custom_call.1} parent=35 // pred_region
          %406 = dma.done %s398, 128
        $region52: #{tpu_custom_call.1} parent=35 // pred_fallthru
          _
        %s407 = sand.u32 %s52, 1
        %s408 = scalar_lea.sflag [#allocation6], %s407
        %s409 = sand.u32 %s52, 1
        %s410 = smul.addr %s409, 8
        %s411 = scalar_lea.vmem [#allocation5], %s410
        %p412 = pneg %p65
        %p413 = pneg %p62
        %s414 = sand.u32 %s32, 1
        %s415 = scalar_lea.sflag [#allocation9], %s414
        %s416 = sand.u32 %s80, 1
        %s417 = smul.addr %s416, 1024
        %s418 = scalar_lea.vmem [#allocation8], %s417
        %p419 = pneg %p93
        %p420 = pneg %p90
        %s421 = sand.u32 %s32, 1
        %s422 = scalar_lea.sflag [#allocation9], %s421
        %s423 = sand.u32 %s108, 1
        %s424 = smul.addr %s423, 1024
        %s425 = scalar_lea.vmem [#allocation10], %s424
        %p426 = pneg %p121
        %p427 = pneg %p118
        %s428 = sand.u32 %s136, 1
        %s429 = scalar_lea.sflag [#allocation12], %s428
        %s430 = sand.u32 %s136, 1
        %s431 = smul.addr %s430, 8
        %s432 = scalar_lea.vmem [#allocation11], %s431
        %p433 = pneg %p149
        %p434 = pneg %p146
        %p435 = pneg %p175
        %p436 = pneg %p172
        %s437 = sand.u32 %s162, 1
        %s438 = scalar_lea.sflag [#allocation7], %s437
        %s439 = sand.u32 %s162, 1
        %s440 = smul.addr %s439, 8
        %s441 = scalar_lea.vmem [#allocation13], %s440
        %p442 = pneg %p201
        %p443 = pneg %p198
        %s444 = sand.u32 %s188, 1
        %s445 = scalar_lea.sflag [#allocation15], %s444
        %s446 = sand.u32 %s188, 1
        %s447 = smul.addr %s446, 16
        %s448 = scalar_lea.vmem [#allocation14], %s447
        %s449 = smul.u32 8, %s36
        %s450 = smul.u32 16, %s37
        %s451 = smul.u32 8, %s36
        %s452 = smul.u32 16, %s37
        %p453 = scmp.eq.s32.totalorder %s37, 0
        // Predicated region
        $region53: #{tpu_custom_call.1} parent=35 // pred_check
          %p454 = pneg %p453
        $region54: #{tpu_custom_call.1} parent=35 // pred_check_branch
          %456 = sbr.rel (%p454) target = $region56
        $region55: #{tpu_custom_call.1} parent=35 // pred_region
          %vm457 = vcmask 7168
          %458 = vst.msk [vmem:[#allocation2] sm:$0xff] %vm457, -inf
          %459 = vst.msk [vmem:[#allocation3] sm:$0xff] %vm457, 0.0
          %460 = vst [vmem:[#allocation4] sm:$0xff] 0.0
        $region56: #{tpu_custom_call.1} parent=35 // pred_fallthru
          _
        %v461 = vld [vmem:[%s371] sm:$0xff]
        %v462 = vld [vmem:[%s381] sm:$0xff]
        %v463 = vld [vmem:[%s381 + $0x8] sm:$0xff]
        %v464 = vld [vmem:[%s381 + $0x10] sm:$0xff]
        %v465 = vld [vmem:[%s381 + $0x18] sm:$0xff]
        %v466 = vld [vmem:[%s381 + $0x20] sm:$0xff]
        %v467 = vld [vmem:[%s381 + $0x28] sm:$0xff]
        %v468 = vld [vmem:[%s381 + $0x30] sm:$0xff]
        %v469 = vld [vmem:[%s381 + $0x38] sm:$0xff]
        %v470 = vld [vmem:[%s381 + $0x40] sm:$0xff]
        %v471 = vld [vmem:[%s381 + $0x48] sm:$0xff]
        %v472 = vld [vmem:[%s381 + $0x50] sm:$0xff]
        %v473 = vld [vmem:[%s381 + $0x58] sm:$0xff]
        %v474 = vld [vmem:[%s381 + $0x60] sm:$0xff]
        %v475 = vld [vmem:[%s381 + $0x68] sm:$0xff]
        %v476 = vld [vmem:[%s381 + $0x70] sm:$0xff]
        %v477 = vld [vmem:[%s381 + $0x78] sm:$0xff]
        %v478 = vld [vmem:[%s381 + $0x80] sm:$0xff]
        %v479 = vld [vmem:[%s381 + $0x88] sm:$0xff]
        %v480 = vld [vmem:[%s381 + $0x90] sm:$0xff]
        %v481 = vld [vmem:[%s381 + $0x98] sm:$0xff]
        %v482 = vld [vmem:[%s381 + $0xa0] sm:$0xff]
        %v483 = vld [vmem:[%s381 + $0xa8] sm:$0xff]
        %v484 = vld [vmem:[%s381 + $0xb0] sm:$0xff]
        %v485 = vld [vmem:[%s381 + $0xb8] sm:$0xff]
        %v486 = vld [vmem:[%s381 + $0xc0] sm:$0xff]
        %v487 = vld [vmem:[%s381 + $0xc8] sm:$0xff]
        %v488 = vld [vmem:[%s381 + $0xd0] sm:$0xff]
        %v489 = vld [vmem:[%s381 + $0xd8] sm:$0xff]
        %v490 = vld [vmem:[%s381 + $0xe0] sm:$0xff]
        %v491 = vld [vmem:[%s381 + $0xe8] sm:$0xff]
        %v492 = vld [vmem:[%s381 + $0xf0] sm:$0xff]
        %v493 = vld [vmem:[%s381 + $0xf8] sm:$0xff]
        %v494 = vld [vmem:[%s381 + $0x100] sm:$0xff]
        %v495 = vld [vmem:[%s381 + $0x108] sm:$0xff]
        %v496 = vld [vmem:[%s381 + $0x110] sm:$0xff]
        %v497 = vld [vmem:[%s381 + $0x118] sm:$0xff]
        %v498 = vld [vmem:[%s381 + $0x120] sm:$0xff]
        %v499 = vld [vmem:[%s381 + $0x128] sm:$0xff]
        %v500 = vld [vmem:[%s381 + $0x130] sm:$0xff]
        %v501 = vld [vmem:[%s381 + $0x138] sm:$0xff]
        %v502 = vld [vmem:[%s381 + $0x140] sm:$0xff]
        %v503 = vld [vmem:[%s381 + $0x148] sm:$0xff]
        %v504 = vld [vmem:[%s381 + $0x150] sm:$0xff]
        %v505 = vld [vmem:[%s381 + $0x158] sm:$0xff]
        %v506 = vld [vmem:[%s381 + $0x160] sm:$0xff]
        %v507 = vld [vmem:[%s381 + $0x168] sm:$0xff]
        %v508 = vld [vmem:[%s381 + $0x170] sm:$0xff]
        %v509 = vld [vmem:[%s381 + $0x178] sm:$0xff]
        %v510 = vld [vmem:[%s381 + $0x180] sm:$0xff]
        %v511 = vld [vmem:[%s381 + $0x188] sm:$0xff]
        %v512 = vld [vmem:[%s381 + $0x190] sm:$0xff]
        %v513 = vld [vmem:[%s381 + $0x198] sm:$0xff]
        %v514 = vld [vmem:[%s381 + $0x1a0] sm:$0xff]
        %v515 = vld [vmem:[%s381 + $0x1a8] sm:$0xff]
        %v516 = vld [vmem:[%s381 + $0x1b0] sm:$0xff]
        %v517 = vld [vmem:[%s381 + $0x1b8] sm:$0xff]
        %v518 = vld [vmem:[%s381 + $0x1c0] sm:$0xff]
        %v519 = vld [vmem:[%s381 + $0x1c8] sm:$0xff]
        %v520 = vld [vmem:[%s381 + $0x1d0] sm:$0xff]
        %v521 = vld [vmem:[%s381 + $0x1d8] sm:$0xff]
        %v522 = vld [vmem:[%s381 + $0x1e0] sm:$0xff]
        %v523 = vld [vmem:[%s381 + $0x1e8] sm:$0xff]
        %v524 = vld [vmem:[%s381 + $0x1f0] sm:$0xff]
        %v525 = vld [vmem:[%s381 + $0x1f8] sm:$0xff]
        %v526 = vld [vmem:[%s381 + $0x200] sm:$0xff]
        %v527 = vld [vmem:[%s381 + $0x208] sm:$0xff]
        %v528 = vld [vmem:[%s381 + $0x210] sm:$0xff]
        %v529 = vld [vmem:[%s381 + $0x218] sm:$0xff]
        %v530 = vld [vmem:[%s381 + $0x220] sm:$0xff]
        %v531 = vld [vmem:[%s381 + $0x228] sm:$0xff]
        %v532 = vld [vmem:[%s381 + $0x230] sm:$0xff]
        %v533 = vld [vmem:[%s381 + $0x238] sm:$0xff]
        %v534 = vld [vmem:[%s381 + $0x240] sm:$0xff]
        %v535 = vld [vmem:[%s381 + $0x248] sm:$0xff]
        %v536 = vld [vmem:[%s381 + $0x250] sm:$0xff]
        %v537 = vld [vmem:[%s381 + $0x258] sm:$0xff]
        %v538 = vld [vmem:[%s381 + $0x260] sm:$0xff]
        %v539 = vld [vmem:[%s381 + $0x268] sm:$0xff]
        %v540 = vld [vmem:[%s381 + $0x270] sm:$0xff]
        %v541 = vld [vmem:[%s381 + $0x278] sm:$0xff]
        %v542 = vld [vmem:[%s381 + $0x280] sm:$0xff]
        %v543 = vld [vmem:[%s381 + $0x288] sm:$0xff]
        %v544 = vld [vmem:[%s381 + $0x290] sm:$0xff]
        %v545 = vld [vmem:[%s381 + $0x298] sm:$0xff]
        %v546 = vld [vmem:[%s381 + $0x2a0] sm:$0xff]
        %v547 = vld [vmem:[%s381 + $0x2a8] sm:$0xff]
        %v548 = vld [vmem:[%s381 + $0x2b0] sm:$0xff]
        %v549 = vld [vmem:[%s381 + $0x2b8] sm:$0xff]
        %v550 = vld [vmem:[%s381 + $0x2c0] sm:$0xff]
        %v551 = vld [vmem:[%s381 + $0x2c8] sm:$0xff]
        %v552 = vld [vmem:[%s381 + $0x2d0] sm:$0xff]
        %v553 = vld [vmem:[%s381 + $0x2d8] sm:$0xff]
        %v554 = vld [vmem:[%s381 + $0x2e0] sm:$0xff]
        %v555 = vld [vmem:[%s381 + $0x2e8] sm:$0xff]
        %v556 = vld [vmem:[%s381 + $0x2f0] sm:$0xff]
        %v557 = vld [vmem:[%s381 + $0x2f8] sm:$0xff]
        %v558 = vld [vmem:[%s381 + $0x300] sm:$0xff]
        %v559 = vld [vmem:[%s381 + $0x308] sm:$0xff]
        %v560 = vld [vmem:[%s381 + $0x310] sm:$0xff]
        %v561 = vld [vmem:[%s381 + $0x318] sm:$0xff]
        %v562 = vld [vmem:[%s381 + $0x320] sm:$0xff]
        %v563 = vld [vmem:[%s381 + $0x328] sm:$0xff]
        %v564 = vld [vmem:[%s381 + $0x330] sm:$0xff]
        %v565 = vld [vmem:[%s381 + $0x338] sm:$0xff]
        %v566 = vld [vmem:[%s381 + $0x340] sm:$0xff]
        %v567 = vld [vmem:[%s381 + $0x348] sm:$0xff]
        %v568 = vld [vmem:[%s381 + $0x350] sm:$0xff]
        %v569 = vld [vmem:[%s381 + $0x358] sm:$0xff]
        %v570 = vld [vmem:[%s381 + $0x360] sm:$0xff]
        %v571 = vld [vmem:[%s381 + $0x368] sm:$0xff]
        %v572 = vld [vmem:[%s381 + $0x370] sm:$0xff]
        %v573 = vld [vmem:[%s381 + $0x378] sm:$0xff]
        %v574 = vld [vmem:[%s381 + $0x380] sm:$0xff]
        %v575 = vld [vmem:[%s381 + $0x388] sm:$0xff]
        %v576 = vld [vmem:[%s381 + $0x390] sm:$0xff]
        %v577 = vld [vmem:[%s381 + $0x398] sm:$0xff]
        %v578 = vld [vmem:[%s381 + $0x3a0] sm:$0xff]
        %v579 = vld [vmem:[%s381 + $0x3a8] sm:$0xff]
        %v580 = vld [vmem:[%s381 + $0x3b0] sm:$0xff]
        %v581 = vld [vmem:[%s381 + $0x3b8] sm:$0xff]
        %v582 = vld [vmem:[%s381 + $0x3c0] sm:$0xff]
        %v583 = vld [vmem:[%s381 + $0x3c8] sm:$0xff]
        %v584 = vld [vmem:[%s381 + $0x3d0] sm:$0xff]
        %v585 = vld [vmem:[%s381 + $0x3d8] sm:$0xff]
        %v586 = vld [vmem:[%s381 + $0x3e0] sm:$0xff]
        %v587 = vld [vmem:[%s381 + $0x3e8] sm:$0xff]
        %v588 = vld [vmem:[%s381 + $0x3f0] sm:$0xff]
        %v589 = vld [vmem:[%s381 + $0x3f8] sm:$0xff]
        %v590 = vld [vmem:[%s391] sm:$0xff]
        %v591 = vld [vmem:[%s391 + $0x8] sm:$0xff]
        %v592 = vld [vmem:[%s391 + $0x10] sm:$0xff]
        %v593 = vld [vmem:[%s391 + $0x18] sm:$0xff]
        %v594 = vld [vmem:[%s391 + $0x20] sm:$0xff]
        %v595 = vld [vmem:[%s391 + $0x28] sm:$0xff]
        %v596 = vld [vmem:[%s391 + $0x30] sm:$0xff]
        %v597 = vld [vmem:[%s391 + $0x38] sm:$0xff]
        %v598 = vld [vmem:[%s391 + $0x40] sm:$0xff]
        %v599 = vld [vmem:[%s391 + $0x48] sm:$0xff]
        %v600 = vld [vmem:[%s391 + $0x50] sm:$0xff]
        %v601 = vld [vmem:[%s391 + $0x58] sm:$0xff]
        %v602 = vld [vmem:[%s391 + $0x60] sm:$0xff]
        %v603 = vld [vmem:[%s391 + $0x68] sm:$0xff]
        %v604 = vld [vmem:[%s391 + $0x70] sm:$0xff]
        %v605 = vld [vmem:[%s391 + $0x78] sm:$0xff]
        %v606 = vld [vmem:[%s391 + $0x80] sm:$0xff]
        %v607 = vld [vmem:[%s391 + $0x88] sm:$0xff]
        %v608 = vld [vmem:[%s391 + $0x90] sm:$0xff]
        %v609 = vld [vmem:[%s391 + $0x98] sm:$0xff]
        %v610 = vld [vmem:[%s391 + $0xa0] sm:$0xff]
        %v611 = vld [vmem:[%s391 + $0xa8] sm:$0xff]
        %v612 = vld [vmem:[%s391 + $0xb0] sm:$0xff]
        %v613 = vld [vmem:[%s391 + $0xb8] sm:$0xff]
        %v614 = vld [vmem:[%s391 + $0xc0] sm:$0xff]
        %v615 = vld [vmem:[%s391 + $0xc8] sm:$0xff]
        %v616 = vld [vmem:[%s391 + $0xd0] sm:$0xff]
        %v617 = vld [vmem:[%s391 + $0xd8] sm:$0xff]
        %v618 = vld [vmem:[%s391 + $0xe0] sm:$0xff]
        %v619 = vld [vmem:[%s391 + $0xe8] sm:$0xff]
        %v620 = vld [vmem:[%s391 + $0xf0] sm:$0xff]
        %v621 = vld [vmem:[%s391 + $0xf8] sm:$0xff]
        %v622 = vld [vmem:[%s391 + $0x100] sm:$0xff]
        %v623 = vld [vmem:[%s391 + $0x108] sm:$0xff]
        %v624 = vld [vmem:[%s391 + $0x110] sm:$0xff]
        %v625 = vld [vmem:[%s391 + $0x118] sm:$0xff]
        %v626 = vld [vmem:[%s391 + $0x120] sm:$0xff]
        %v627 = vld [vmem:[%s391 + $0x128] sm:$0xff]
        %v628 = vld [vmem:[%s391 + $0x130] sm:$0xff]
        %v629 = vld [vmem:[%s391 + $0x138] sm:$0xff]
        %v630 = vld [vmem:[%s391 + $0x140] sm:$0xff]
        %v631 = vld [vmem:[%s391 + $0x148] sm:$0xff]
        %v632 = vld [vmem:[%s391 + $0x150] sm:$0xff]
        %v633 = vld [vmem:[%s391 + $0x158] sm:$0xff]
        %v634 = vld [vmem:[%s391 + $0x160] sm:$0xff]
        %v635 = vld [vmem:[%s391 + $0x168] sm:$0xff]
        %v636 = vld [vmem:[%s391 + $0x170] sm:$0xff]
        %v637 = vld [vmem:[%s391 + $0x178] sm:$0xff]
        %v638 = vld [vmem:[%s391 + $0x180] sm:$0xff]
        %v639 = vld [vmem:[%s391 + $0x188] sm:$0xff]
        %v640 = vld [vmem:[%s391 + $0x190] sm:$0xff]
        %v641 = vld [vmem:[%s391 + $0x198] sm:$0xff]
        %v642 = vld [vmem:[%s391 + $0x1a0] sm:$0xff]
        %v643 = vld [vmem:[%s391 + $0x1a8] sm:$0xff]
        %v644 = vld [vmem:[%s391 + $0x1b0] sm:$0xff]
        %v645 = vld [vmem:[%s391 + $0x1b8] sm:$0xff]
        %v646 = vld [vmem:[%s391 + $0x1c0] sm:$0xff]
        %v647 = vld [vmem:[%s391 + $0x1c8] sm:$0xff]
        %v648 = vld [vmem:[%s391 + $0x1d0] sm:$0xff]
        %v649 = vld [vmem:[%s391 + $0x1d8] sm:$0xff]
        %v650 = vld [vmem:[%s391 + $0x1e0] sm:$0xff]
        %v651 = vld [vmem:[%s391 + $0x1e8] sm:$0xff]
        %v652 = vld [vmem:[%s391 + $0x1f0] sm:$0xff]
        %v653 = vld [vmem:[%s391 + $0x1f8] sm:$0xff]
        %v654 = vld [vmem:[%s391 + $0x200] sm:$0xff]
        %v655 = vld [vmem:[%s391 + $0x208] sm:$0xff]
        %v656 = vld [vmem:[%s391 + $0x210] sm:$0xff]
        %v657 = vld [vmem:[%s391 + $0x218] sm:$0xff]
        %v658 = vld [vmem:[%s391 + $0x220] sm:$0xff]
        %v659 = vld [vmem:[%s391 + $0x228] sm:$0xff]
        %v660 = vld [vmem:[%s391 + $0x230] sm:$0xff]
        %v661 = vld [vmem:[%s391 + $0x238] sm:$0xff]
        %v662 = vld [vmem:[%s391 + $0x240] sm:$0xff]
        %v663 = vld [vmem:[%s391 + $0x248] sm:$0xff]
        %v664 = vld [vmem:[%s391 + $0x250] sm:$0xff]
        %v665 = vld [vmem:[%s391 + $0x258] sm:$0xff]
        %v666 = vld [vmem:[%s391 + $0x260] sm:$0xff]
        %v667 = vld [vmem:[%s391 + $0x268] sm:$0xff]
        %v668 = vld [vmem:[%s391 + $0x270] sm:$0xff]
        %v669 = vld [vmem:[%s391 + $0x278] sm:$0xff]
        %v670 = vld [vmem:[%s391 + $0x280] sm:$0xff]
        %v671 = vld [vmem:[%s391 + $0x288] sm:$0xff]
        %v672 = vld [vmem:[%s391 + $0x290] sm:$0xff]
        %v673 = vld [vmem:[%s391 + $0x298] sm:$0xff]
        %v674 = vld [vmem:[%s391 + $0x2a0] sm:$0xff]
        %v675 = vld [vmem:[%s391 + $0x2a8] sm:$0xff]
        %v676 = vld [vmem:[%s391 + $0x2b0] sm:$0xff]
        %v677 = vld [vmem:[%s391 + $0x2b8] sm:$0xff]
        %v678 = vld [vmem:[%s391 + $0x2c0] sm:$0xff]
        %v679 = vld [vmem:[%s391 + $0x2c8] sm:$0xff]
        %v680 = vld [vmem:[%s391 + $0x2d0] sm:$0xff]
        %v681 = vld [vmem:[%s391 + $0x2d8] sm:$0xff]
        %v682 = vld [vmem:[%s391 + $0x2e0] sm:$0xff]
        %v683 = vld [vmem:[%s391 + $0x2e8] sm:$0xff]
        %v684 = vld [vmem:[%s391 + $0x2f0] sm:$0xff]
        %v685 = vld [vmem:[%s391 + $0x2f8] sm:$0xff]
        %v686 = vld [vmem:[%s391 + $0x300] sm:$0xff]
        %v687 = vld [vmem:[%s391 + $0x308] sm:$0xff]
        %v688 = vld [vmem:[%s391 + $0x310] sm:$0xff]
        %v689 = vld [vmem:[%s391 + $0x318] sm:$0xff]
        %v690 = vld [vmem:[%s391 + $0x320] sm:$0xff]
        %v691 = vld [vmem:[%s391 + $0x328] sm:$0xff]
        %v692 = vld [vmem:[%s391 + $0x330] sm:$0xff]
        %v693 = vld [vmem:[%s391 + $0x338] sm:$0xff]
        %v694 = vld [vmem:[%s391 + $0x340] sm:$0xff]
        %v695 = vld [vmem:[%s391 + $0x348] sm:$0xff]
        %v696 = vld [vmem:[%s391 + $0x350] sm:$0xff]
        %v697 = vld [vmem:[%s391 + $0x358] sm:$0xff]
        %v698 = vld [vmem:[%s391 + $0x360] sm:$0xff]
        %v699 = vld [vmem:[%s391 + $0x368] sm:$0xff]
        %v700 = vld [vmem:[%s391 + $0x370] sm:$0xff]
        %v701 = vld [vmem:[%s391 + $0x378] sm:$0xff]
        %v702 = vld [vmem:[%s391 + $0x380] sm:$0xff]
        %v703 = vld [vmem:[%s391 + $0x388] sm:$0xff]
        %v704 = vld [vmem:[%s391 + $0x390] sm:$0xff]
        %v705 = vld [vmem:[%s391 + $0x398] sm:$0xff]
        %v706 = vld [vmem:[%s391 + $0x3a0] sm:$0xff]
        %v707 = vld [vmem:[%s391 + $0x3a8] sm:$0xff]
        %v708 = vld [vmem:[%s391 + $0x3b0] sm:$0xff]
        %v709 = vld [vmem:[%s391 + $0x3b8] sm:$0xff]
        %v710 = vld [vmem:[%s391 + $0x3c0] sm:$0xff]
        %v711 = vld [vmem:[%s391 + $0x3c8] sm:$0xff]
        %v712 = vld [vmem:[%s391 + $0x3d0] sm:$0xff]
        %v713 = vld [vmem:[%s391 + $0x3d8] sm:$0xff]
        %v714 = vld [vmem:[%s391 + $0x3e0] sm:$0xff]
        %v715 = vld [vmem:[%s391 + $0x3e8] sm:$0xff]
        %v716 = vld [vmem:[%s391 + $0x3f0] sm:$0xff]
        %v717 = vld [vmem:[%s391 + $0x3f8] sm:$0xff]
        %v718 = vld [vmem:[%s401] sm:$0xff]
        %v720 = vrot.slane %v461, 1
        %v721 = vrot.slane %v461, 2
        %v722 = vrot.slane %v461, 3
        %v723 = vrot.slane %v461, 4
        %v724 = vrot.slane %v461, 5
        %v725 = vrot.slane %v461, 6
        %v726 = vrot.slane %v461, 7
        %734 = vmatpush.xpose.msra.mxu0 %v477
        %735 = vmatpush.xpose.msra.mxu0 %v476
        %736 = vmatpush.xpose.msra.mxu0 %v475
        %737 = vmatpush.xpose.msra.mxu0 %v474
        %738 = vmatpush.xpose.msra.mxu0 %v473
        %739 = vmatpush.xpose.msra.mxu0 %v472
        %740 = vmatpush.xpose.msra.mxu0 %v471
        %741 = vmatpush.xpose.msra.mxu0 %v470
        %742 = vmatpush.xpose.msra.mxu0 %v469
        %743 = vmatpush.xpose.msra.mxu0 %v468
        %744 = vmatpush.xpose.msra.mxu0 %v467
        %745 = vmatpush.xpose.msra.mxu0 %v466
        %746 = vmatpush.xpose.msra.mxu0 %v465
        %747 = vmatpush.xpose.msra.mxu0 %v464
        %748 = vmatpush.xpose.msra.mxu0 %v463
        %749 = vmatpush.xpose.msra.mxu0 %v462
        %750 = vmatmul.f32.gmra.mxu0 %v461
        %v751 = vpop.f32.mrf.mxu0
        %v752 = vadd.f32 0.0, %v751
        %753 = vdwg.mxu0
        %754 = vmatpush.xpose.msra.mxu0 %v493
        %755 = vmatpush.xpose.msra.mxu0 %v492
        %756 = vmatpush.xpose.msra.mxu0 %v491
        %757 = vmatpush.xpose.msra.mxu0 %v490
        %758 = vmatpush.xpose.msra.mxu0 %v489
        %759 = vmatpush.xpose.msra.mxu0 %v488
        %760 = vmatpush.xpose.msra.mxu0 %v487
        %761 = vmatpush.xpose.msra.mxu0 %v486
        %762 = vmatpush.xpose.msra.mxu0 %v485
        %763 = vmatpush.xpose.msra.mxu0 %v484
        %764 = vmatpush.xpose.msra.mxu0 %v483
        %765 = vmatpush.xpose.msra.mxu0 %v482
        %766 = vmatpush.xpose.msra.mxu0 %v481
        %767 = vmatpush.xpose.msra.mxu0 %v480
        %768 = vmatpush.xpose.msra.mxu0 %v479
        %769 = vmatpush.xpose.msra.mxu0 %v478
        %770 = vmatmul.f32.gmra.mxu0 %v720
        %v771 = vpop.f32.mrf.mxu0
        %v772 = vadd.f32 0.0, %v771
        %773 = vdwg.mxu0
        %774 = vmatpush.xpose.msra.mxu0 %v509
        %775 = vmatpush.xpose.msra.mxu0 %v508
        %776 = vmatpush.xpose.msra.mxu0 %v507
        %777 = vmatpush.xpose.msra.mxu0 %v506
        %778 = vmatpush.xpose.msra.mxu0 %v505
        %779 = vmatpush.xpose.msra.mxu0 %v504
        %780 = vmatpush.xpose.msra.mxu0 %v503
        %781 = vmatpush.xpose.msra.mxu0 %v502
        %782 = vmatpush.xpose.msra.mxu0 %v501
        %783 = vmatpush.xpose.msra.mxu0 %v500
        %784 = vmatpush.xpose.msra.mxu0 %v499
        %785 = vmatpush.xpose.msra.mxu0 %v498
        %786 = vmatpush.xpose.msra.mxu0 %v497
        %787 = vmatpush.xpose.msra.mxu0 %v496
        %788 = vmatpush.xpose.msra.mxu0 %v495
        %789 = vmatpush.xpose.msra.mxu0 %v494
        %790 = vmatmul.f32.gmra.mxu0 %v721
        %v791 = vpop.f32.mrf.mxu0
        %v792 = vadd.f32 0.0, %v791
        %793 = vdwg.mxu0
        %794 = vmatpush.xpose.msra.mxu0 %v525
        %795 = vmatpush.xpose.msra.mxu0 %v524
        %796 = vmatpush.xpose.msra.mxu0 %v523
        %797 = vmatpush.xpose.msra.mxu0 %v522
        %798 = vmatpush.xpose.msra.mxu0 %v521
        %799 = vmatpush.xpose.msra.mxu0 %v520
        %800 = vmatpush.xpose.msra.mxu0 %v519
        %801 = vmatpush.xpose.msra.mxu0 %v518
        %802 = vmatpush.xpose.msra.mxu0 %v517
        %803 = vmatpush.xpose.msra.mxu0 %v516
        %804 = vmatpush.xpose.msra.mxu0 %v515
        %805 = vmatpush.xpose.msra.mxu0 %v514
        %806 = vmatpush.xpose.msra.mxu0 %v513
        %807 = vmatpush.xpose.msra.mxu0 %v512
        %808 = vmatpush.xpose.msra.mxu0 %v511
        %809 = vmatpush.xpose.msra.mxu0 %v510
        %810 = vmatmul.f32.gmra.mxu0 %v722
        %v811 = vpop.f32.mrf.mxu0
        %v812 = vadd.f32 0.0, %v811
        %813 = vdwg.mxu0
        %814 = vmatpush.xpose.msra.mxu0 %v541
        %815 = vmatpush.xpose.msra.mxu0 %v540
        %816 = vmatpush.xpose.msra.mxu0 %v539
        %817 = vmatpush.xpose.msra.mxu0 %v538
        %818 = vmatpush.xpose.msra.mxu0 %v537
        %819 = vmatpush.xpose.msra.mxu0 %v536
        %820 = vmatpush.xpose.msra.mxu0 %v535
        %821 = vmatpush.xpose.msra.mxu0 %v534
        %822 = vmatpush.xpose.msra.mxu0 %v533
        %823 = vmatpush.xpose.msra.mxu0 %v532
        %824 = vmatpush.xpose.msra.mxu0 %v531
        %825 = vmatpush.xpose.msra.mxu0 %v530
        %826 = vmatpush.xpose.msra.mxu0 %v529
        %827 = vmatpush.xpose.msra.mxu0 %v528
        %828 = vmatpush.xpose.msra.mxu0 %v527
        %829 = vmatpush.xpose.msra.mxu0 %v526
        %830 = vmatmul.f32.gmra.mxu0 %v723
        %v831 = vpop.f32.mrf.mxu0
        %v832 = vadd.f32 0.0, %v831
        %833 = vdwg.mxu0
        %834 = vmatpush.xpose.msra.mxu0 %v557
        %835 = vmatpush.xpose.msra.mxu0 %v556
        %836 = vmatpush.xpose.msra.mxu0 %v555
        %837 = vmatpush.xpose.msra.mxu0 %v554
        %838 = vmatpush.xpose.msra.mxu0 %v553
        %839 = vmatpush.xpose.msra.mxu0 %v552
        %840 = vmatpush.xpose.msra.mxu0 %v551
        %841 = vmatpush.xpose.msra.mxu0 %v550
        %842 = vmatpush.xpose.msra.mxu0 %v549
        %843 = vmatpush.xpose.msra.mxu0 %v548
        %844 = vmatpush.xpose.msra.mxu0 %v547
        %845 = vmatpush.xpose.msra.mxu0 %v546
        %846 = vmatpush.xpose.msra.mxu0 %v545
        %847 = vmatpush.xpose.msra.mxu0 %v544
        %848 = vmatpush.xpose.msra.mxu0 %v543
        %849 = vmatpush.xpose.msra.mxu0 %v542
        %850 = vmatmul.f32.gmra.mxu0 %v724
        %v851 = vpop.f32.mrf.mxu0
        %v852 = vadd.f32 0.0, %v851
        %853 = vdwg.mxu0
        %854 = vmatpush.xpose.msra.mxu0 %v573
        %855 = vmatpush.xpose.msra.mxu0 %v572
        %856 = vmatpush.xpose.msra.mxu0 %v571
        %857 = vmatpush.xpose.msra.mxu0 %v570
        %858 = vmatpush.xpose.msra.mxu0 %v569
        %859 = vmatpush.xpose.msra.mxu0 %v568
        %860 = vmatpush.xpose.msra.mxu0 %v567
        %861 = vmatpush.xpose.msra.mxu0 %v566
        %862 = vmatpush.xpose.msra.mxu0 %v565
        %863 = vmatpush.xpose.msra.mxu0 %v564
        %864 = vmatpush.xpose.msra.mxu0 %v563
        %865 = vmatpush.xpose.msra.mxu0 %v562
        %866 = vmatpush.xpose.msra.mxu0 %v561
        %867 = vmatpush.xpose.msra.mxu0 %v560
        %868 = vmatpush.xpose.msra.mxu0 %v559
        %869 = vmatpush.xpose.msra.mxu0 %v558
        %870 = vmatmul.f32.gmra.mxu0 %v725
        %v871 = vpop.f32.mrf.mxu0
        %v872 = vadd.f32 0.0, %v871
        %873 = vdwg.mxu0
        %874 = vmatpush.xpose.msra.mxu0 %v589
        %875 = vmatpush.xpose.msra.mxu0 %v588
        %876 = vmatpush.xpose.msra.mxu0 %v587
        %877 = vmatpush.xpose.msra.mxu0 %v586
        %878 = vmatpush.xpose.msra.mxu0 %v585
        %879 = vmatpush.xpose.msra.mxu0 %v584
        %880 = vmatpush.xpose.msra.mxu0 %v583
        %881 = vmatpush.xpose.msra.mxu0 %v582
        %882 = vmatpush.xpose.msra.mxu0 %v581
        %883 = vmatpush.xpose.msra.mxu0 %v580
        %884 = vmatpush.xpose.msra.mxu0 %v579
        %885 = vmatpush.xpose.msra.mxu0 %v578
        %886 = vmatpush.xpose.msra.mxu0 %v577
        %887 = vmatpush.xpose.msra.mxu0 %v576
        %888 = vmatpush.xpose.msra.mxu0 %v575
        %889 = vmatpush.xpose.msra.mxu0 %v574
        %890 = vmatmul.f32.gmra.mxu0 %v726
        %v891 = vpop.f32.mrf.mxu0
        %v892 = vadd.f32 0.0, %v891
        %893 = vdwg.mxu0
        %vm894 = vcmp.ne.s32.totalorder %v718, 0
        %v903 = vrot.slane %v772, 7
        %vm904 = vcmask 1041409
        %v905 = vsel %vm904, %v903, %v752
        %v906 = vrot.slane %v792, 6
        %vm907 = vcmask 1042434
        %v908 = vsel %vm907, %v906, %v905
        %v909 = vrot.slane %v812, 5
        %vm910 = vcmask 1043459
        %v911 = vsel %vm910, %v909, %v908
        %v912 = vrot.slane %v832, 4
        %vm913 = vcmask 1044484
        %v914 = vsel %vm913, %v912, %v911
        %v915 = vrot.slane %v852, 3
        %vm916 = vcmask 1045509
        %v917 = vsel %vm916, %v915, %v914
        %v918 = vrot.slane %v872, 2
        %vm919 = vcmask 1046534
        %v920 = vsel %vm919, %v918, %v917
        %v921 = vrot.slane %v892, 1
        %vm922 = vcmask 1047559
        %v923 = vsel %vm922, %v921, %v920
        %v925 = vsel %vm894, -1e+09, %v923
        %v926 = vmul.f32 %v925, 0.088388346
        %s927 = smul.u32 %s37, 128
        %s928 = sshra.s32 %s927, 7
        %s929 = sand.u32 %s927, 127
        %s930 = smul.addr %s928, 8
        %s931 = scalar_lea.vmem %s448, %s930 [#allocation14]
        %932 = vst [vmem:[%s931] sm:$0xff] %v926
        %v933 = vld [vmem:[#allocation2] sm:$0xff]
        %934 = vmax.xlane.f32.xlu0 %v926
        %v935 = vpop.xlane.xlu0 %934
        %v936 = vmax.f32 %v933, %v935
        %v937 = vsub.f32 %v933, %v936
        %v938 = vmul.f32 %v937, 1.442695
        %v939 = vpow.pop %v938
        %941 = vset.pattern.permute.xlu0 0
        %942 = vperm.xlu0 %941, %v936
        %v943 = vpop.permute.xlu0 %942
        %v945 = vsub.f32 %v926, %v943
        %v946 = vmul.f32 %v945, 1.442695
        %v947 = vpow.pop %v946
        %v948 = vld [vmem:[#allocation3] sm:$0xff]
        %v949 = vmul.f32 %v939, %v948
        %950 = vadd.xlane.f32.xlu0 %v947
        %v951 = vpop.xlane.xlu0 %950
        %v952 = vadd.f32 %v949, %v951
        %vm953 = vcmask 7168
        %954 = vst.msk [vmem:[#allocation3] sm:$0xff] %vm953, %v952
        %v956 = vrot.slane %v947, 1
        %v957 = vrot.slane %v947, 2
        %v958 = vrot.slane %v947, 3
        %v959 = vrot.slane %v947, 4
        %v960 = vrot.slane %v947, 5
        %v961 = vrot.slane %v947, 6
        %v962 = vrot.slane %v947, 7
        %970 = vmatpush.msra.mxu0 %v605
        %971 = vmatpush.msra.mxu0 %v604
        %972 = vmatpush.msra.mxu0 %v603
        %973 = vmatpush.msra.mxu0 %v602
        %974 = vmatpush.msra.mxu0 %v601
        %975 = vmatpush.msra.mxu0 %v600
        %976 = vmatpush.msra.mxu0 %v599
        %977 = vmatpush.msra.mxu0 %v598
        %978 = vmatpush.msra.mxu0 %v597
        %979 = vmatpush.msra.mxu0 %v596
        %980 = vmatpush.msra.mxu0 %v595
        %981 = vmatpush.msra.mxu0 %v594
        %982 = vmatpush.msra.mxu0 %v593
        %983 = vmatpush.msra.mxu0 %v592
        %984 = vmatpush.msra.mxu0 %v591
        %985 = vmatpush.msra.mxu0 %v590
        %986 = vmatmul.f32.gmra.mxu0 %v947
        %v987 = vpop.f32.mrf.mxu0
        %v988 = vadd.f32 0.0, %v987
        %989 = vdwg.mxu0
        %990 = vmatpush.msra.mxu0 %v621
        %991 = vmatpush.msra.mxu0 %v620
        %992 = vmatpush.msra.mxu0 %v619
        %993 = vmatpush.msra.mxu0 %v618
        %994 = vmatpush.msra.mxu0 %v617
        %995 = vmatpush.msra.mxu0 %v616
        %996 = vmatpush.msra.mxu0 %v615
        %997 = vmatpush.msra.mxu0 %v614
        %998 = vmatpush.msra.mxu0 %v613
        %999 = vmatpush.msra.mxu0 %v612
        %1000 = vmatpush.msra.mxu0 %v611
        %1001 = vmatpush.msra.mxu0 %v610
        %1002 = vmatpush.msra.mxu0 %v609
        %1003 = vmatpush.msra.mxu0 %v608
        %1004 = vmatpush.msra.mxu0 %v607
        %1005 = vmatpush.msra.mxu0 %v606
        %1006 = vmatmul.f32.gmra.mxu0 %v956
        %v1007 = vpop.f32.mrf.mxu0
        %v1008 = vadd.f32 0.0, %v1007
        %1009 = vdwg.mxu0
        %1010 = vmatpush.msra.mxu0 %v637
        %1011 = vmatpush.msra.mxu0 %v636
        %1012 = vmatpush.msra.mxu0 %v635
        %1013 = vmatpush.msra.mxu0 %v634
        %1014 = vmatpush.msra.mxu0 %v633
        %1015 = vmatpush.msra.mxu0 %v632
        %1016 = vmatpush.msra.mxu0 %v631
        %1017 = vmatpush.msra.mxu0 %v630
        %1018 = vmatpush.msra.mxu0 %v629
        %1019 = vmatpush.msra.mxu0 %v628
        %1020 = vmatpush.msra.mxu0 %v627
        %1021 = vmatpush.msra.mxu0 %v626
        %1022 = vmatpush.msra.mxu0 %v625
        %1023 = vmatpush.msra.mxu0 %v624
        %1024 = vmatpush.msra.mxu0 %v623
        %1025 = vmatpush.msra.mxu0 %v622
        %1026 = vmatmul.f32.gmra.mxu0 %v957
        %v1027 = vpop.f32.mrf.mxu0
        %v1028 = vadd.f32 0.0, %v1027
        %1029 = vdwg.mxu0
        %1030 = vmatpush.msra.mxu0 %v653
        %1031 = vmatpush.msra.mxu0 %v652
        %1032 = vmatpush.msra.mxu0 %v651
        %1033 = vmatpush.msra.mxu0 %v650
        %1034 = vmatpush.msra.mxu0 %v649
        %1035 = vmatpush.msra.mxu0 %v648
        %1036 = vmatpush.msra.mxu0 %v647
        %1037 = vmatpush.msra.mxu0 %v646
        %1038 = vmatpush.msra.mxu0 %v645
        %1039 = vmatpush.msra.mxu0 %v644
        %1040 = vmatpush.msra.mxu0 %v643
        %1041 = vmatpush.msra.mxu0 %v642
        %1042 = vmatpush.msra.mxu0 %v641
        %1043 = vmatpush.msra.mxu0 %v640
        %1044 = vmatpush.msra.mxu0 %v639
        %1045 = vmatpush.msra.mxu0 %v638
        %1046 = vmatmul.f32.gmra.mxu0 %v958
        %v1047 = vpop.f32.mrf.mxu0
        %v1048 = vadd.f32 0.0, %v1047
        %1049 = vdwg.mxu0
        %1050 = vmatpush.msra.mxu0 %v669
        %1051 = vmatpush.msra.mxu0 %v668
        %1052 = vmatpush.msra.mxu0 %v667
        %1053 = vmatpush.msra.mxu0 %v666
        %1054 = vmatpush.msra.mxu0 %v665
        %1055 = vmatpush.msra.mxu0 %v664
        %1056 = vmatpush.msra.mxu0 %v663
        %1057 = vmatpush.msra.mxu0 %v662
        %1058 = vmatpush.msra.mxu0 %v661
        %1059 = vmatpush.msra.mxu0 %v660
        %1060 = vmatpush.msra.mxu0 %v659
        %1061 = vmatpush.msra.mxu0 %v658
        %1062 = vmatpush.msra.mxu0 %v657
        %1063 = vmatpush.msra.mxu0 %v656
        %1064 = vmatpush.msra.mxu0 %v655
        %1065 = vmatpush.msra.mxu0 %v654
        %1066 = vmatmul.f32.gmra.mxu0 %v959
        %v1067 = vpop.f32.mrf.mxu0
        %v1068 = vadd.f32 0.0, %v1067
        %1069 = vdwg.mxu0
        %1070 = vmatpush.msra.mxu0 %v685
        %1071 = vmatpush.msra.mxu0 %v684
        %1072 = vmatpush.msra.mxu0 %v683
        %1073 = vmatpush.msra.mxu0 %v682
        %1074 = vmatpush.msra.mxu0 %v681
        %1075 = vmatpush.msra.mxu0 %v680
        %1076 = vmatpush.msra.mxu0 %v679
        %1077 = vmatpush.msra.mxu0 %v678
        %1078 = vmatpush.msra.mxu0 %v677
        %1079 = vmatpush.msra.mxu0 %v676
        %1080 = vmatpush.msra.mxu0 %v675
        %1081 = vmatpush.msra.mxu0 %v674
        %1082 = vmatpush.msra.mxu0 %v673
        %1083 = vmatpush.msra.mxu0 %v672
        %1084 = vmatpush.msra.mxu0 %v671
        %1085 = vmatpush.msra.mxu0 %v670
        %1086 = vmatmul.f32.gmra.mxu0 %v960
        %v1087 = vpop.f32.mrf.mxu0
        %v1088 = vadd.f32 0.0, %v1087
        %1089 = vdwg.mxu0
        %1090 = vmatpush.msra.mxu0 %v701
        %1091 = vmatpush.msra.mxu0 %v700
        %1092 = vmatpush.msra.mxu0 %v699
        %1093 = vmatpush.msra.mxu0 %v698
        %1094 = vmatpush.msra.mxu0 %v697
        %1095 = vmatpush.msra.mxu0 %v696
        %1096 = vmatpush.msra.mxu0 %v695
        %1097 = vmatpush.msra.mxu0 %v694
        %1098 = vmatpush.msra.mxu0 %v693
        %1099 = vmatpush.msra.mxu0 %v692
        %1100 = vmatpush.msra.mxu0 %v691
        %1101 = vmatpush.msra.mxu0 %v690
        %1102 = vmatpush.msra.mxu0 %v689
        %1103 = vmatpush.msra.mxu0 %v688
        %1104 = vmatpush.msra.mxu0 %v687
        %1105 = vmatpush.msra.mxu0 %v686
        %1106 = vmatmul.f32.gmra.mxu0 %v961
        %v1107 = vpop.f32.mrf.mxu0
        %v1108 = vadd.f32 0.0, %v1107
        %1109 = vdwg.mxu0
        %1110 = vmatpush.msra.mxu0 %v717
        %1111 = vmatpush.msra.mxu0 %v716
        %1112 = vmatpush.msra.mxu0 %v715
        %1113 = vmatpush.msra.mxu0 %v714
        %1114 = vmatpush.msra.mxu0 %v713
        %1115 = vmatpush.msra.mxu0 %v712
        %1116 = vmatpush.msra.mxu0 %v711
        %1117 = vmatpush.msra.mxu0 %v710
        %1118 = vmatpush.msra.mxu0 %v709
        %1119 = vmatpush.msra.mxu0 %v708
        %1120 = vmatpush.msra.mxu0 %v707
        %1121 = vmatpush.msra.mxu0 %v706
        %1122 = vmatpush.msra.mxu0 %v705
        %1123 = vmatpush.msra.mxu0 %v704
        %1124 = vmatpush.msra.mxu0 %v703
        %1125 = vmatpush.msra.mxu0 %v702
        %1126 = vmatmul.f32.gmra.mxu0 %v962
        %v1127 = vpop.f32.mrf.mxu0
        %v1128 = vadd.f32 0.0, %v1127
        %1129 = vdwg.mxu0
        %v1130 = vld [vmem:[#allocation4] sm:$0xff]
        %1132 = vset.pattern.permute.xlu0 0
        %1133 = vperm.xlu0 %1132, %v939
        %v1134 = vpop.permute.xlu0 %1133
        %v1136 = vmul.f32 %v1134, %v1130
        %v1145 = vrot.slane %v1008, 7
        %v1146 = vsel %vm904, %v1145, %v988
        %v1147 = vrot.slane %v1028, 6
        %v1148 = vsel %vm907, %v1147, %v1146
        %v1149 = vrot.slane %v1048, 5
        %v1150 = vsel %vm910, %v1149, %v1148
        %v1151 = vrot.slane %v1068, 4
        %v1152 = vsel %vm913, %v1151, %v1150
        %v1153 = vrot.slane %v1088, 3
        %v1154 = vsel %vm916, %v1153, %v1152
        %v1155 = vrot.slane %v1108, 2
        %v1156 = vsel %vm919, %v1155, %v1154
        %v1157 = vrot.slane %v1128, 1
        %v1158 = vsel %vm922, %v1157, %v1156
        %v1160 = vadd.f32 %v1136, %v1158
        %1161 = vst [vmem:[#allocation4] sm:$0xff] %v1160
        %1162 = vst.msk [vmem:[#allocation2] sm:$0xff] %vm953, %v936
        %p1163 = scmp.eq.s32.totalorder %s37, 1
        // Predicated region
        $region57: #{tpu_custom_call.1} parent=35 // pred_check
          %p1164 = pneg %p1163
        $region58: #{tpu_custom_call.1} parent=35 // pred_check_branch
          %1166 = sbr.rel (%p1164) target = $region60
        $region59: #{tpu_custom_call.1} parent=35 // pred_region
          %v1167 = vld [vmem:[#allocation3] sm:$0xff]
          %v1168 = vrcp.pop %v1167
          %v1169 = vmul.f32 %v1167, %v1168
          %v1170 = vsub.f32 1.0, %v1169
          %v1171 = vmul.f32 %v1168, %v1170
          %v1172 = vadd.f32 %v1168, %v1171
          %vm1173 = vweird.f32 %v1167
          %vm1174 = vweird.f32 %v1168
          %vm1175 = vmor %vm1173, %vm1174
          %v1176 = vsel %vm1175, %v1168, %v1172
          %v1177 = vand.u32 2147483647, %v1167
          %vm1178 = vcmp.eq.f32.partialorder %v1177, 8.507059e+37
          %v1179 = vand.u32 %v1167, 2147483648
          %v1180 = vor.u32 1.1754944e-38, %v1179
          %v1181 = vsel %vm1178, %v1180, %v1176
          %v1182 = vmul.f32 1.0, %v1181
          %v1183 = vld [vmem:[#allocation4] sm:$0xff]
          %1185 = vset.pattern.permute.xlu0 0
          %1186 = vperm.xlu0 %1185, %v1182
          %v1187 = vpop.permute.xlu0 %1186
          %v1189 = vmul.f32 %v1183, %v1187
          %1190 = vst [vmem:[%s441] sm:$0xff] %v1189
          %v1191 = vld [vmem:[%s448] sm:$0xff]
          %v1192 = vld [vmem:[%s448 + $0x8] sm:$0xff]
          %v1193 = vld [vmem:[#allocation2] sm:$0xff]
          %1195 = vset.pattern.permute.xlu0 0
          %1196 = vperm.xlu0 %1195, %v1193
          %v1197 = vpop.permute.xlu0 %1196
          %v1199 = vsub.f32 %v1191, %v1197
          %v1200 = vsub.f32 %v1192, %v1197
          %v1201 = vmul.f32 %v1199, 1.442695
          %v1202 = vpow.pop %v1201
          %v1203 = vmul.f32 %v1200, 1.442695
          %v1204 = vpow.pop %v1203
          %v1205 = vmul.f32 %v1202, %v1187
          %v1206 = vmul.f32 %v1204, %v1187
          %1207 = vst [vmem:[%s448] sm:$0xff] %v1205
          %1208 = vst [vmem:[%s448 + $0x8] sm:$0xff] %v1206
        $region60: #{tpu_custom_call.1} parent=35 // pred_fallthru
          _
        %s1209 = sand.u32 %s162, 1
        %s1210 = scalar_lea.sflag [#allocation7], %s1209
        %s1211 = sand.u32 %s162, 1
        %s1212 = smul.addr %s1211, 8
        %s1213 = scalar_lea.vmem [#allocation13], %s1212
        %s1214 = sand.u32 %s188, 1
        %s1215 = scalar_lea.sflag [#allocation15], %s1214
        %s1216 = sand.u32 %s188, 1
        %s1217 = smul.addr %s1216, 16
        %s1218 = scalar_lea.vmem [#allocation14], %s1217
        // Predicated region
        $region61: #{tpu_custom_call.1} parent=35 // pred_check
          %p1219 = pneg %p172
        $region62: #{tpu_custom_call.1} parent=35 // pred_check_branch
          %1221 = sbr.rel (%p1219) target = $region64
        $region63: #{tpu_custom_call.1} parent=35 // pred_region
          %1223 = vsyncadd %s1210, 0
          %s1224 = smul.addr %s36, 8
          %s1225 = scalar_lea.hbm %s4, %s1224
          %s1227 = sshll.u32 %s1213, 4
          %s1228 = int_to_ptr.vmem [resolvable:$true] %s1227
          %s1229 = sshll.u32 %s1225, 4
          %s1230 = int_to_ptr.hbm [resolvable:$true] %s1229
          %1232 = dma.vmem_to_hbm [thread:$0]  %s1228, 128, %s1230, %s1210
        $region64: #{tpu_custom_call.1} parent=35 // pred_fallthru
          _
        // Predicated region
        $region65: #{tpu_custom_call.1} parent=35 // pred_check
          %p1233 = pneg %p198
        $region66: #{tpu_custom_call.1} parent=35 // pred_check_branch
          %1235 = sbr.rel (%p1233) target = $region68
        $region67: #{tpu_custom_call.1} parent=35 // pred_region
          %1237 = vsyncadd %s1215, 0
          %s1238 = smul.addr %s36, 2
          %s1239 = smul.addr %s1238, 8
          %s1240 = scalar_lea.hbm %s5, %s1239
          %s1242 = sshll.u32 %s1218, 4
          %s1243 = int_to_ptr.vmem [resolvable:$true] %s1242
          %s1244 = sshll.u32 %s1240, 4
          %s1245 = int_to_ptr.hbm [resolvable:$true] %s1244
          %1247 = dma.vmem_to_hbm [thread:$0]  %s1243, 256, %s1245, %s1215
        $region68: #{tpu_custom_call.1} parent=35 // pred_fallthru
          _
      $region36: #{tpu_custom_call.1} parent=5 // pred_fallthru
        _
      %p1248 = scmp.le.s32.totalorder 2, %s27
      // Predicated region
      $region69: #{tpu_custom_call.1} parent=5 // pred_check
        %p1249 = pneg %p1248
      $region70: #{tpu_custom_call.1} parent=5 // pred_check_branch
        %1251 = sbr.rel (%p1249) target = $region72
      $region71: #{tpu_custom_call.1} parent=5 // pred_region
        %s1252 = ssub.s32 %s27, 2
        // Predicated region
        $region73: #{tpu_custom_call.1} parent=71 // pred_check
          %p1253 = pneg %p178
        $region74: #{tpu_custom_call.1} parent=71 // pred_check_branch
          %1255 = sbr.rel (%p1253) target = $region76
        $region75: #{tpu_custom_call.1} parent=71 // pred_region
          %s1256 = sand.u32 %s163, 1
          %s1257 = scalar_lea.sflag [#allocation7], %s1256
          %s1258 = sand.u32 %s163, 1
          %s1259 = smul.addr %s1258, 8
          %s1260 = scalar_lea.vmem [#allocation13], %s1259
          %1262 = dma.done %s1257, 128
        $region76: #{tpu_custom_call.1} parent=71 // pred_fallthru
          _
        // Predicated region
        $region77: #{tpu_custom_call.1} parent=71 // pred_check
          %p1263 = pneg %p204
        $region78: #{tpu_custom_call.1} parent=71 // pred_check_branch
          %1265 = sbr.rel (%p1263) target = $region80
        $region79: #{tpu_custom_call.1} parent=71 // pred_region
          %s1266 = sand.u32 %s189, 1
          %s1267 = scalar_lea.sflag [#allocation15], %s1266
          %s1268 = sand.u32 %s189, 1
          %s1269 = smul.addr %s1268, 16
          %s1270 = scalar_lea.vmem [#allocation14], %s1269
          %1272 = dma.done %s1267, 256
        $region80: #{tpu_custom_call.1} parent=71 // pred_fallthru
          _
      $region72: #{tpu_custom_call.1} parent=5 // pred_fallthru
        _
    $region6: #{tpu_custom_call.1} parent=1 // loop_footer
      %s31 = sadd.s32 1, %s27
    $region7: #{tpu_custom_call.1} parent=1 // loop_footer_branch
      %26 = sbr.rel target = $region3
    $region8: #{tpu_custom_call.1} parent=1 // loop_exit
      _
    %1273 = vsyncpa [#allocation6], 1
    %s1274 = scalar_lea.sflag [#allocation6], 1
    %1275 = vsyncpa %s1274, 1
    %1276 = vsyncpa [#allocation9], 1
    %s1277 = scalar_lea.sflag [#allocation9], 1
    %1278 = vsyncpa %s1277, 1
    %1279 = vsyncpa [#allocation12], 1
    %s1280 = scalar_lea.sflag [#allocation12], 1
    %1281 = vsyncpa %s1280, 1
    %1282 = vsyncpa [#allocation7], 1
    %s1283 = scalar_lea.sflag [#allocation7], 1
    %1284 = vsyncpa %s1283, 1
    %1285 = vsyncpa [#allocation15], 1
    %s1286 = scalar_lea.sflag [#allocation15], 1
    %1287 = vsyncpa %s1286, 1

</llo_original>
